<compile_context>
chip_gen: v5e
topology: v5e:2x2
jax: 0.10.0
libtpu: 0.0.40
codegen_flags: <defaults>
</compile_context>

<pallas_src>
import jax
import jax.numpy as jnp
from jax.experimental import pallas as pl
from jax.experimental.pallas import tpu as pltpu


def _make_kernel(num_layers):
    dilations = [2 ** i for i in range(num_layers)]

    def kernel(x_ref, m_ref, bm_ref, w_in_ref, b_in_ref,
               wd_ref, bd_ref, w1_ref, b1_ref, w_out_ref, b_out_ref, o_ref):
        x = x_ref[...]                      # [D, N] bf16 (cast once on host)
        m = m_ref[...]                      # [1, N] f32 validity mask
        n = x.shape[1]

        # input 1x1 conv (bf16 MXU, f32 accumulation); elementwise stays f32
        h = (jnp.dot(w_in_ref[...], x, preferred_element_type=jnp.float32)
             + b_in_ref[...])               # [F, N] f32

        for li, d in enumerate(dilations):
            # One K=F matmul producing the three taps stacked on the output dim
            # (M = 3F).  Rolling along lanes and per-column masking commute with
            # the channel contraction, so shifting the per-tap OUTPUTS equals the
            # shifted-input dilated conv — no [3F, N] stacked-input temp needed.
            u = jnp.dot(wd_ref[li], h.astype(jnp.bfloat16),
                        preferred_element_type=jnp.float32)      # [3F, N] f32
            f = u.shape[0] // 3
            u_left, u_center, u_right = u[:f], u[f:2 * f], u[2 * f:]

            # Precomputed per-sequence boundary masks (also stop cross-batch
            # leakage from the circular lane roll across folded sequences).
            lm = bm_ref[2 * li:2 * li + 1, :]        # (t >= d)      [1, N]
            rm = bm_ref[2 * li + 1:2 * li + 2, :]    # (t < T - d)   [1, N]

            y = (pltpu.roll(u_left, shift=d, axis=1) * lm          # tap at t-d
                 + u_center                                        # tap at t
                 + pltpu.roll(u_right, shift=(n - d) % n, axis=1) * rm  # t+d
                 + bd_ref[li])
            y = jnp.maximum(y, 0.0)                                # ReLU (f32)

            z = (jnp.dot(w1_ref[li], y.astype(jnp.bfloat16),
                         preferred_element_type=jnp.float32) + b1_ref[li])
            # dropout: eval-mode identity
            h = (h + z) * m                                        # residual + mask

        logits = (jnp.dot(w_out_ref[...], h.astype(jnp.bfloat16),
                          preferred_element_type=jnp.float32) + b_out_ref[...])
        o_ref[...] = (logits * m).astype(o_ref.dtype)

    return kernel


def single_stage_model(x, mask, params, *, num_layers, batch_block=None):
    """x: [B, D, T] f32, mask: [B, Cm, T] f32 -> [B, num_classes, T] f32."""
    B, D, T = x.shape
    F = params["w_in"].shape[0]
    C = params["w_out"].shape[0]
    L = num_layers
    bf = jnp.bfloat16

    if batch_block is None:
        # Prefer grid >= 2 (megacore on v7x, pipelining everywhere) while keeping
        # the per-step lane width a multiple of 128 (unmasked lane-dense stores).
        batch_block = B
        if B % 2 == 0 and ((B // 2) * T) % 128 == 0:
            batch_block = B // 2
    GB = batch_block
    assert B % GB == 0, "batch_block must divide batch"
    N = B * T
    Nb = GB * T

    # --- fold batch into lanes (column index = b*T + t); bf16 activations once ---
    x_f = x.transpose(1, 0, 2).reshape(D, N).astype(bf)       # [D, B*T] bf16
    m_f = mask[:, 0, :].reshape(1, N)                          # [1, B*T] f32

    # --- per-layer boundary masks, precomputed host-side: rows (2*li, 2*li+1) ---
    t = jnp.arange(T, dtype=jnp.int32)
    rows = []
    for li in range(L):
        d = 2 ** li
        rows.append((t >= d).astype(jnp.float32))              # left-tap validity
        rows.append((t < T - d).astype(jnp.float32))           # right-tap validity
    bmask = jnp.tile(jnp.stack(rows, axis=0), (1, GB))         # [2L, GB*T]

    # --- pack weights: stacked per-layer operands, bf16 once ---
    wd_stack = jnp.stack([params["layers"][li]["wd"].reshape(3 * F, F)
                          for li in range(L)], axis=0).astype(bf)      # [L, 3F, F]
    bd = jnp.stack([params["layers"][li]["bd"] for li in range(L)],
                   axis=0).reshape(L, F, 1)                             # [L, F, 1]
    w1 = jnp.stack([params["layers"][li]["w1"] for li in range(L)],
                   axis=0).astype(bf)                                   # [L, F, F]
    b1 = jnp.stack([params["layers"][li]["b1"] for li in range(L)],
                   axis=0).reshape(L, F, 1)                             # [L, F, 1]

    operands = [x_f, m_f, bmask,
                params["w_in"].astype(bf), params["b_in"].reshape(F, 1),
                wd_stack, bd, w1, b1,
                params["w_out"].astype(bf), params["b_out"].reshape(C, 1)]

    def full_spec(a):
        nd = a.ndim
        return pl.BlockSpec(a.shape, lambda g, _nd=nd: (0,) * _nd)

    in_specs = [
        pl.BlockSpec((D, Nb), lambda g: (0, g)),          # x (folded, bf16)
        pl.BlockSpec((1, Nb), lambda g: (0, g)),          # validity-mask row
        pl.BlockSpec((2 * L, Nb), lambda g: (0, 0)),      # per-layer boundary masks
    ] + [full_spec(a) for a in operands[3:]]              # packed weights / biases

    out_spec = pl.BlockSpec((C, Nb), lambda g: (0, g))

    # Explicit VMEM budget (per review): per-step working set + headroom.
    per_step = (
        2 * (D * Nb * 2)                  # x block, double-buffered bf16
        + 2 * (C * Nb * 4)                # out block, double-buffered f32
        + 2 * (Nb * 4)                    # validity-mask row
        + 2 * (2 * L * Nb * 4)            # boundary masks
        + 8 * (F * Nb * 4)                # h / u / y / z live temps (generous)
        + 4 * (F * D + 4 * L * F * F + C * F)   # bf16 weights, 2 buffers
        + 8 * (F + 2 * L * F + C)               # f32 biases, 2 buffers
    )
    vmem_limit = int(min(100 * 2 ** 20, max(32 * 2 ** 20, 2 * per_step)))

    out_folded = pl.pallas_call(
        _make_kernel(L),
        out_shape=jax.ShapeDtypeStruct((C, N), jnp.float32),
        grid_spec=pltpu.PrefetchScalarGridSpec(
            num_scalar_prefetch=0,
            grid=(B // GB,),
            in_specs=in_specs,
            out_specs=out_spec,
        ),
        compiler_params=pltpu.CompilerParams(
            dimension_semantics=("parallel",),
            vmem_limit_bytes=vmem_limit,
        ),
    )(*operands)

    return out_folded.reshape(C, B, T).transpose(1, 0, 2)     # [B, C, T]


# ----------------------------- pure-JAX references -----------------------------
def ref_forward(x, mask, params, *, num_layers, matmul_dtype=jnp.float32):
    """matmul_dtype=f32 -> exact module semantics; bf16 -> kernel-consistent numerics."""
    def mm(w, h):
        return jnp.einsum("oi,bit->bot", w.astype(matmul_dtype), h.astype(matmul_dtype),
                          preferred_element_type=jnp.float32)

    m1 = mask[:, 0:1, :]
    T = x.shape[-1]
    h = mm(params["w_in"], x) + params["b_in"][None, :, None]
    for li in range(num_layers):
        p = params["layers"][li]
        d = 2 ** li
        hp = jnp.pad(h, ((0, 0), (0, 0), (d, d)))
        left, center, right = hp[..., :T], hp[..., d:d + T], hp[..., 2 * d:2 * d + T]
        y = jax.nn.relu(mm(p["wd"][0], left) + mm(p["wd"][1], center)
                        + mm(p["wd"][2], right) + p["bd"][None, :, None])
        z = mm(p["w1"], y) + p["b1"][None, :, None]
        h = (h + z) * m1
    out = mm(params["w_out"], h) + params["b_out"][None, :, None]
    return out * m1


# ----------------------------------- main -------------------------------------
if __name__ == "__main__":
    B, D, T = 2, 32, 256          # batch, input feature dim, num frames
    F, C = 64, 8                  # num_f_maps, num_classes
    NUM_LAYERS = 3

    key = jax.random.PRNGKey(0)
    ks = jax.random.split(key, 4 + 4 * NUM_LAYERS)

    def uinit(k, shape, fan_in):
        bound = 1.0 / jnp.sqrt(jnp.float32(fan_in))
        return jax.random.uniform(k, shape, jnp.float32, -bound, bound)

    params = {
        "w_in": uinit(ks[0], (F, D), D),
        "b_in": uinit(ks[1], (F,), D),
        "w_out": uinit(ks[2], (C, F), F),
        "b_out": uinit(ks[3], (C,), F),
        "layers": [],
    }
    for li in range(NUM_LAYERS):
        base = 4 + 4 * li
        params["layers"].append({
            "wd": uinit(ks[base + 0], (3, F, F), 3 * F),   # taps [t-d, t, t+d]
            "bd": uinit(ks[base + 1], (F,), 3 * F),
            "w1": uinit(ks[base + 2], (F, F), F),
            "b1": uinit(ks[base + 3], (F,), F),
        })

    kx, _ = jax.random.split(jax.random.PRNGKey(1))
    x = jax.random.normal(kx, (B, D, T), jnp.float32)
    # binary validity mask [B, num_classes, T] (like MS-TCN); only row 0 is used
    lengths = jnp.array([T, T - 57], dtype=jnp.int32)
    mask = (jnp.arange(T)[None, :] < lengths[:, None]).astype(jnp.float32)
    mask = jnp.broadcast_to(mask[:, None, :], (B, C, T))

    out = single_stage_model(x, mask, params, num_layers=NUM_LAYERS)
    out = jax.block_until_ready(out)
    assert out.shape == (B, C, T)

    # Tight check vs. a reference with the same bf16-matmul / f32-accumulate numerics.
    ref_bf = ref_forward(x, mask, params, num_layers=NUM_LAYERS, matmul_dtype=jnp.bfloat16)
    err_bf = float(jnp.max(jnp.abs(out - ref_bf)))
    assert err_bf < 1e-2, f"bf16-reference mismatch: {err_bf}"

    # Loose sanity check vs. the exact f32 module semantics (bf16 MXU rounding only).
    ref_f32 = ref_forward(x, mask, params, num_layers=NUM_LAYERS, matmul_dtype=jnp.float32)
    err_f32 = float(jnp.max(jnp.abs(out - ref_f32)))
    assert err_f32 < 0.15, f"f32-reference mismatch: {err_f32}"

    print("KERNEL_OK")
</pallas_src>

<mosaic_0001>
module attributes {stable_mosaic.version = 11 : i64} {
  func.func @kernel(%arg0: i32, %arg1: memref<32x256xbf16, #tpu.memory_space<vmem>>, %arg2: memref<1x256xf32, #tpu.memory_space<vmem>>, %arg3: memref<6x256xf32, #tpu.memory_space<vmem>>, %arg4: memref<64x32xbf16, #tpu.memory_space<vmem>>, %arg5: memref<64x1xf32, #tpu.memory_space<vmem>>, %arg6: memref<3x192x64xbf16, #tpu.memory_space<vmem>>, %arg7: memref<3x64x1xf32, #tpu.memory_space<vmem>>, %arg8: memref<3x64x64xbf16, #tpu.memory_space<vmem>>, %arg9: memref<3x64x1xf32, #tpu.memory_space<vmem>>, %arg10: memref<8x64xbf16, #tpu.memory_space<vmem>>, %arg11: memref<8x1xf32, #tpu.memory_space<vmem>>, %arg12: memref<8x256xf32, #tpu.memory_space<vmem>>) attributes {dimension_semantics = [#tpu.dimension_semantics<parallel>], iteration_bounds = array<i64: 2>, scalar_prefetch = 0 : i64, scratch_operands = 0 : i64, tpu.core_type = #tpu.core_type<tc>, window_params = [{transform_indices = @transform_0, window_bounds = array<i64: 32, 256>}, {transform_indices = @transform_1, window_bounds = array<i64: 1, 256>}, {pipeline_mode = #tpu.pipeline_mode<synchronous>, transform_indices = @transform_2, window_bounds = array<i64: 6, 256>}, {pipeline_mode = #tpu.pipeline_mode<synchronous>, transform_indices = @transform_3, window_bounds = array<i64: 64, 32>}, {pipeline_mode = #tpu.pipeline_mode<synchronous>, transform_indices = @transform_4, window_bounds = array<i64: 64, 1>}, {pipeline_mode = #tpu.pipeline_mode<synchronous>, transform_indices = @transform_5, window_bounds = array<i64: 3, 192, 64>}, {pipeline_mode = #tpu.pipeline_mode<synchronous>, transform_indices = @transform_6, window_bounds = array<i64: 3, 64, 1>}, {pipeline_mode = #tpu.pipeline_mode<synchronous>, transform_indices = @transform_7, window_bounds = array<i64: 3, 64, 64>}, {pipeline_mode = #tpu.pipeline_mode<synchronous>, transform_indices = @transform_8, window_bounds = array<i64: 3, 64, 1>}, {pipeline_mode = #tpu.pipeline_mode<synchronous>, transform_indices = @transform_9, window_bounds = array<i64: 8, 64>}, {pipeline_mode = #tpu.pipeline_mode<synchronous>, transform_indices = @transform_10, window_bounds = array<i64: 8, 1>}, {transform_indices = @transform_11, window_bounds = array<i64: 8, 256>}]} {
    %c0 = arith.constant 0 : index
    %c0_0 = arith.constant 0 : index
    %0 = vector.load %arg1[%c0, %c0_0] : memref<32x256xbf16, #tpu.memory_space<vmem>>, vector<32x256xbf16>
    %c0_1 = arith.constant 0 : index
    %c0_2 = arith.constant 0 : index
    %1 = vector.load %arg2[%c0_1, %c0_2] : memref<1x256xf32, #tpu.memory_space<vmem>>, vector<1x256xf32>
    %c0_3 = arith.constant 0 : index
    %c0_4 = arith.constant 0 : index
    %2 = vector.load %arg4[%c0_3, %c0_4] : memref<64x32xbf16, #tpu.memory_space<vmem>>, vector<64x32xbf16>
    %cst = arith.constant dense<0.000000e+00> : vector<64x256xf32>
    %3 = tpu.matmul %2, %0, %cst {dimension_numbers = #tpu.dot_dimension_numbers<[1], [0], [0], [1], [0, 0, 1, 1], [], []>} : vector<64x32xbf16>, vector<32x256xbf16>, vector<64x256xf32> -> vector<64x256xf32>
    %c0_5 = arith.constant 0 : index
    %c0_6 = arith.constant 0 : index
    %4 = vector.load %arg5[%c0_5, %c0_6] : memref<64x1xf32, #tpu.memory_space<vmem>>, vector<64x1xf32>
    %5 = vector.broadcast %4 : vector<64x1xf32> to vector<64x256xf32>
    %6 = arith.addf %3, %5 : vector<64x256xf32>
    %c0_7 = arith.constant 0 : index
    %c0_8 = arith.constant 0 : index
    %c0_9 = arith.constant 0 : index
    %7 = vector.load %arg6[%c0_7, %c0_8, %c0_9] : memref<3x192x64xbf16, #tpu.memory_space<vmem>>, vector<1x192x64xbf16>
    %8 = vector.shape_cast %7 : vector<1x192x64xbf16> to vector<192x64xbf16>
    %9 = arith.truncf %6 : vector<64x256xf32> to vector<64x256xbf16>
    %cst_10 = arith.constant dense<0.000000e+00> : vector<192x256xf32>
    %10 = tpu.matmul %8, %9, %cst_10 {dimension_numbers = #tpu.dot_dimension_numbers<[1], [0], [0], [1], [0, 0, 1, 1], [], []>} : vector<192x64xbf16>, vector<64x256xbf16>, vector<192x256xf32> -> vector<192x256xf32>
    %11 = vector.extract_strided_slice %10 {offsets = [0, 0], sizes = [64, 256], strides = [1, 1]} : vector<192x256xf32> to vector<64x256xf32>
    %12 = vector.extract_strided_slice %10 {offsets = [64, 0], sizes = [64, 256], strides = [1, 1]} : vector<192x256xf32> to vector<64x256xf32>
    %13 = vector.extract_strided_slice %10 {offsets = [128, 0], sizes = [64, 256], strides = [1, 1]} : vector<192x256xf32> to vector<64x256xf32>
    %c0_11 = arith.constant 0 : index
    %c0_12 = arith.constant 0 : index
    %14 = vector.load %arg3[%c0_11, %c0_12] : memref<6x256xf32, #tpu.memory_space<vmem>>, vector<1x256xf32>
    %c1 = arith.constant 1 : index
    %c0_13 = arith.constant 0 : index
    %15 = vector.load %arg3[%c1, %c0_13] : memref<6x256xf32, #tpu.memory_space<vmem>>, vector<1x256xf32>
    %c1_i32 = arith.constant 1 : i32
    %16 = tpu.dynamic_rotate %11 by %c1_i32 dim 1 : vector<64x256xf32>, i32 -> vector<64x256xf32>
    %17 = vector.broadcast %14 : vector<1x256xf32> to vector<64x256xf32>
    %18 = arith.mulf %16, %17 : vector<64x256xf32>
    %19 = arith.addf %18, %12 : vector<64x256xf32>
    %c255_i32 = arith.constant 255 : i32
    %20 = tpu.dynamic_rotate %13 by %c255_i32 dim 1 : vector<64x256xf32>, i32 -> vector<64x256xf32>
    %21 = vector.broadcast %15 : vector<1x256xf32> to vector<64x256xf32>
    %22 = arith.mulf %20, %21 : vector<64x256xf32>
    %23 = arith.addf %19, %22 : vector<64x256xf32>
    %c0_14 = arith.constant 0 : index
    %c0_15 = arith.constant 0 : index
    %c0_16 = arith.constant 0 : index
    %24 = vector.load %arg7[%c0_14, %c0_15, %c0_16] : memref<3x64x1xf32, #tpu.memory_space<vmem>>, vector<1x64x1xf32>
    %25 = vector.shape_cast %24 : vector<1x64x1xf32> to vector<64x1xf32>
    %26 = vector.broadcast %25 : vector<64x1xf32> to vector<64x256xf32>
    %27 = arith.addf %23, %26 : vector<64x256xf32>
    %cst_17 = arith.constant 0.000000e+00 : f32
    %28 = vector.broadcast %cst_17 : f32 to vector<64x256xf32>
    %29 = arith.maximumf %27, %28 : vector<64x256xf32>
    %c0_18 = arith.constant 0 : index
    %c0_19 = arith.constant 0 : index
    %c0_20 = arith.constant 0 : index
    %30 = vector.load %arg8[%c0_18, %c0_19, %c0_20] : memref<3x64x64xbf16, #tpu.memory_space<vmem>>, vector<1x64x64xbf16>
    %31 = vector.shape_cast %30 : vector<1x64x64xbf16> to vector<64x64xbf16>
    %32 = arith.truncf %29 : vector<64x256xf32> to vector<64x256xbf16>
    %cst_21 = arith.constant dense<0.000000e+00> : vector<64x256xf32>
    %33 = tpu.matmul %31, %32, %cst_21 {dimension_numbers = #tpu.dot_dimension_numbers<[1], [0], [0], [1], [0, 0, 1, 1], [], []>} : vector<64x64xbf16>, vector<64x256xbf16>, vector<64x256xf32> -> vector<64x256xf32>
    %c0_22 = arith.constant 0 : index
    %c0_23 = arith.constant 0 : index
    %c0_24 = arith.constant 0 : index
    %34 = vector.load %arg9[%c0_22, %c0_23, %c0_24] : memref<3x64x1xf32, #tpu.memory_space<vmem>>, vector<1x64x1xf32>
    %35 = vector.shape_cast %34 : vector<1x64x1xf32> to vector<64x1xf32>
    %36 = vector.broadcast %35 : vector<64x1xf32> to vector<64x256xf32>
    %37 = arith.addf %33, %36 : vector<64x256xf32>
    %38 = arith.addf %6, %37 : vector<64x256xf32>
    %39 = vector.broadcast %1 : vector<1x256xf32> to vector<64x256xf32>
    %40 = arith.mulf %38, %39 : vector<64x256xf32>
    %c1_25 = arith.constant 1 : index
    %c0_26 = arith.constant 0 : index
    %c0_27 = arith.constant 0 : index
    %41 = vector.load %arg6[%c1_25, %c0_26, %c0_27] : memref<3x192x64xbf16, #tpu.memory_space<vmem>>, vector<1x192x64xbf16>
    %42 = vector.shape_cast %41 : vector<1x192x64xbf16> to vector<192x64xbf16>
    %43 = arith.truncf %40 : vector<64x256xf32> to vector<64x256xbf16>
    %cst_28 = arith.constant dense<0.000000e+00> : vector<192x256xf32>
    %44 = tpu.matmul %42, %43, %cst_28 {dimension_numbers = #tpu.dot_dimension_numbers<[1], [0], [0], [1], [0, 0, 1, 1], [], []>} : vector<192x64xbf16>, vector<64x256xbf16>, vector<192x256xf32> -> vector<192x256xf32>
    %45 = vector.extract_strided_slice %44 {offsets = [0, 0], sizes = [64, 256], strides = [1, 1]} : vector<192x256xf32> to vector<64x256xf32>
    %46 = vector.extract_strided_slice %44 {offsets = [64, 0], sizes = [64, 256], strides = [1, 1]} : vector<192x256xf32> to vector<64x256xf32>
    %47 = vector.extract_strided_slice %44 {offsets = [128, 0], sizes = [64, 256], strides = [1, 1]} : vector<192x256xf32> to vector<64x256xf32>
    %c2 = arith.constant 2 : index
    %c0_29 = arith.constant 0 : index
    %48 = vector.load %arg3[%c2, %c0_29] : memref<6x256xf32, #tpu.memory_space<vmem>>, vector<1x256xf32>
    %c3 = arith.constant 3 : index
    %c0_30 = arith.constant 0 : index
    %49 = vector.load %arg3[%c3, %c0_30] : memref<6x256xf32, #tpu.memory_space<vmem>>, vector<1x256xf32>
    %c2_i32 = arith.constant 2 : i32
    %50 = tpu.dynamic_rotate %45 by %c2_i32 dim 1 : vector<64x256xf32>, i32 -> vector<64x256xf32>
    %51 = vector.broadcast %48 : vector<1x256xf32> to vector<64x256xf32>
    %52 = arith.mulf %50, %51 : vector<64x256xf32>
    %53 = arith.addf %52, %46 : vector<64x256xf32>
    %c254_i32 = arith.constant 254 : i32
    %54 = tpu.dynamic_rotate %47 by %c254_i32 dim 1 : vector<64x256xf32>, i32 -> vector<64x256xf32>
    %55 = vector.broadcast %49 : vector<1x256xf32> to vector<64x256xf32>
    %56 = arith.mulf %54, %55 : vector<64x256xf32>
    %57 = arith.addf %53, %56 : vector<64x256xf32>
    %c1_31 = arith.constant 1 : index
    %c0_32 = arith.constant 0 : index
    %c0_33 = arith.constant 0 : index
    %58 = vector.load %arg7[%c1_31, %c0_32, %c0_33] : memref<3x64x1xf32, #tpu.memory_space<vmem>>, vector<1x64x1xf32>
    %59 = vector.shape_cast %58 : vector<1x64x1xf32> to vector<64x1xf32>
    %60 = vector.broadcast %59 : vector<64x1xf32> to vector<64x256xf32>
    %61 = arith.addf %57, %60 : vector<64x256xf32>
    %cst_34 = arith.constant 0.000000e+00 : f32
    %62 = vector.broadcast %cst_34 : f32 to vector<64x256xf32>
    %63 = arith.maximumf %61, %62 : vector<64x256xf32>
    %c1_35 = arith.constant 1 : index
    %c0_36 = arith.constant 0 : index
    %c0_37 = arith.constant 0 : index
    %64 = vector.load %arg8[%c1_35, %c0_36, %c0_37] : memref<3x64x64xbf16, #tpu.memory_space<vmem>>, vector<1x64x64xbf16>
    %65 = vector.shape_cast %64 : vector<1x64x64xbf16> to vector<64x64xbf16>
    %66 = arith.truncf %63 : vector<64x256xf32> to vector<64x256xbf16>
    %cst_38 = arith.constant dense<0.000000e+00> : vector<64x256xf32>
    %67 = tpu.matmul %65, %66, %cst_38 {dimension_numbers = #tpu.dot_dimension_numbers<[1], [0], [0], [1], [0, 0, 1, 1], [], []>} : vector<64x64xbf16>, vector<64x256xbf16>, vector<64x256xf32> -> vector<64x256xf32>
    %c1_39 = arith.constant 1 : index
    %c0_40 = arith.constant 0 : index
    %c0_41 = arith.constant 0 : index
    %68 = vector.load %arg9[%c1_39, %c0_40, %c0_41] : memref<3x64x1xf32, #tpu.memory_space<vmem>>, vector<1x64x1xf32>
    %69 = vector.shape_cast %68 : vector<1x64x1xf32> to vector<64x1xf32>
    %70 = vector.broadcast %69 : vector<64x1xf32> to vector<64x256xf32>
    %71 = arith.addf %67, %70 : vector<64x256xf32>
    %72 = arith.addf %40, %71 : vector<64x256xf32>
    %73 = vector.broadcast %1 : vector<1x256xf32> to vector<64x256xf32>
    %74 = arith.mulf %72, %73 : vector<64x256xf32>
    %c2_42 = arith.constant 2 : index
    %c0_43 = arith.constant 0 : index
    %c0_44 = arith.constant 0 : index
    %75 = vector.load %arg6[%c2_42, %c0_43, %c0_44] : memref<3x192x64xbf16, #tpu.memory_space<vmem>>, vector<1x192x64xbf16>
    %76 = vector.shape_cast %75 : vector<1x192x64xbf16> to vector<192x64xbf16>
    %77 = arith.truncf %74 : vector<64x256xf32> to vector<64x256xbf16>
    %cst_45 = arith.constant dense<0.000000e+00> : vector<192x256xf32>
    %78 = tpu.matmul %76, %77, %cst_45 {dimension_numbers = #tpu.dot_dimension_numbers<[1], [0], [0], [1], [0, 0, 1, 1], [], []>} : vector<192x64xbf16>, vector<64x256xbf16>, vector<192x256xf32> -> vector<192x256xf32>
    %79 = vector.extract_strided_slice %78 {offsets = [0, 0], sizes = [64, 256], strides = [1, 1]} : vector<192x256xf32> to vector<64x256xf32>
    %80 = vector.extract_strided_slice %78 {offsets = [64, 0], sizes = [64, 256], strides = [1, 1]} : vector<192x256xf32> to vector<64x256xf32>
    %81 = vector.extract_strided_slice %78 {offsets = [128, 0], sizes = [64, 256], strides = [1, 1]} : vector<192x256xf32> to vector<64x256xf32>
    %c4 = arith.constant 4 : index
    %c0_46 = arith.constant 0 : index
    %82 = vector.load %arg3[%c4, %c0_46] : memref<6x256xf32, #tpu.memory_space<vmem>>, vector<1x256xf32>
    %c5 = arith.constant 5 : index
    %c0_47 = arith.constant 0 : index
    %83 = vector.load %arg3[%c5, %c0_47] : memref<6x256xf32, #tpu.memory_space<vmem>>, vector<1x256xf32>
    %c4_i32 = arith.constant 4 : i32
    %84 = tpu.dynamic_rotate %79 by %c4_i32 dim 1 : vector<64x256xf32>, i32 -> vector<64x256xf32>
    %85 = vector.broadcast %82 : vector<1x256xf32> to vector<64x256xf32>
    %86 = arith.mulf %84, %85 : vector<64x256xf32>
    %87 = arith.addf %86, %80 : vector<64x256xf32>
    %c252_i32 = arith.constant 252 : i32
    %88 = tpu.dynamic_rotate %81 by %c252_i32 dim 1 : vector<64x256xf32>, i32 -> vector<64x256xf32>
    %89 = vector.broadcast %83 : vector<1x256xf32> to vector<64x256xf32>
    %90 = arith.mulf %88, %89 : vector<64x256xf32>
    %91 = arith.addf %87, %90 : vector<64x256xf32>
    %c2_48 = arith.constant 2 : index
    %c0_49 = arith.constant 0 : index
    %c0_50 = arith.constant 0 : index
    %92 = vector.load %arg7[%c2_48, %c0_49, %c0_50] : memref<3x64x1xf32, #tpu.memory_space<vmem>>, vector<1x64x1xf32>
    %93 = vector.shape_cast %92 : vector<1x64x1xf32> to vector<64x1xf32>
    %94 = vector.broadcast %93 : vector<64x1xf32> to vector<64x256xf32>
    %95 = arith.addf %91, %94 : vector<64x256xf32>
    %cst_51 = arith.constant 0.000000e+00 : f32
    %96 = vector.broadcast %cst_51 : f32 to vector<64x256xf32>
    %97 = arith.maximumf %95, %96 : vector<64x256xf32>
    %c2_52 = arith.constant 2 : index
    %c0_53 = arith.constant 0 : index
    %c0_54 = arith.constant 0 : index
    %98 = vector.load %arg8[%c2_52, %c0_53, %c0_54] : memref<3x64x64xbf16, #tpu.memory_space<vmem>>, vector<1x64x64xbf16>
    %99 = vector.shape_cast %98 : vector<1x64x64xbf16> to vector<64x64xbf16>
    %100 = arith.truncf %97 : vector<64x256xf32> to vector<64x256xbf16>
    %cst_55 = arith.constant dense<0.000000e+00> : vector<64x256xf32>
    %101 = tpu.matmul %99, %100, %cst_55 {dimension_numbers = #tpu.dot_dimension_numbers<[1], [0], [0], [1], [0, 0, 1, 1], [], []>} : vector<64x64xbf16>, vector<64x256xbf16>, vector<64x256xf32> -> vector<64x256xf32>
    %c2_56 = arith.constant 2 : index
    %c0_57 = arith.constant 0 : index
    %c0_58 = arith.constant 0 : index
    %102 = vector.load %arg9[%c2_56, %c0_57, %c0_58] : memref<3x64x1xf32, #tpu.memory_space<vmem>>, vector<1x64x1xf32>
    %103 = vector.shape_cast %102 : vector<1x64x1xf32> to vector<64x1xf32>
    %104 = vector.broadcast %103 : vector<64x1xf32> to vector<64x256xf32>
    %105 = arith.addf %101, %104 : vector<64x256xf32>
    %106 = arith.addf %74, %105 : vector<64x256xf32>
    %107 = vector.broadcast %1 : vector<1x256xf32> to vector<64x256xf32>
    %108 = arith.mulf %106, %107 : vector<64x256xf32>
    %c0_59 = arith.constant 0 : index
    %c0_60 = arith.constant 0 : index
    %109 = vector.load %arg10[%c0_59, %c0_60] : memref<8x64xbf16, #tpu.memory_space<vmem>>, vector<8x64xbf16>
    %110 = arith.truncf %108 : vector<64x256xf32> to vector<64x256xbf16>
    %cst_61 = arith.constant dense<0.000000e+00> : vector<8x256xf32>
    %111 = tpu.matmul %109, %110, %cst_61 {dimension_numbers = #tpu.dot_dimension_numbers<[1], [0], [0], [1], [0, 0, 1, 1], [], []>} : vector<8x64xbf16>, vector<64x256xbf16>, vector<8x256xf32> -> vector<8x256xf32>
    %c0_62 = arith.constant 0 : index
    %c0_63 = arith.constant 0 : index
    %112 = vector.load %arg11[%c0_62, %c0_63] : memref<8x1xf32, #tpu.memory_space<vmem>>, vector<8x1xf32>
    %113 = vector.broadcast %112 : vector<8x1xf32> to vector<8x256xf32>
    %114 = arith.addf %111, %113 : vector<8x256xf32>
    %115 = vector.broadcast %1 : vector<1x256xf32> to vector<8x256xf32>
    %116 = arith.mulf %114, %115 : vector<8x256xf32>
    %c0_64 = arith.constant 0 : index
    %c0_65 = arith.constant 0 : index
    %117 = vector.load %arg12[%c0_64, %c0_65] : memref<8x256xf32, #tpu.memory_space<vmem>>, vector<8x256xf32>
    tpu.vector_store %arg12[%c0_64, %c0_65], %116 {strides = array<i32>} : memref<8x256xf32, #tpu.memory_space<vmem>>, vector<8x256xf32>,
    return
  }
  func.func @transform_0(%arg0: i32) -> (i32, i32) {
    %c0_i32 = arith.constant 0 : i32
    %c0_i32_0 = arith.constant 0 : i32
    return %c0_i32, %arg0 : i32, i32
  }
  func.func @transform_1(%arg0: i32) -> (i32, i32) {
    %c0_i32 = arith.constant 0 : i32
    %c0_i32_0 = arith.constant 0 : i32
    return %c0_i32, %arg0 : i32, i32
  }
  func.func @transform_2(%arg0: i32) -> (i32, i32) {
    %c0_i32 = arith.constant 0 : i32
    %c0_i32_0 = arith.constant 0 : i32
    %c0_i32_1 = arith.constant 0 : i32
    return %c0_i32, %c0_i32_0 : i32, i32
  }
  func.func @transform_3(%arg0: i32) -> (i32, i32) {
    %c0_i32 = arith.constant 0 : i32
    %c0_i32_0 = arith.constant 0 : i32
    %c0_i32_1 = arith.constant 0 : i32
    return %c0_i32, %c0_i32_0 : i32, i32
  }
  func.func @transform_4(%arg0: i32) -> (i32, i32) {
    %c0_i32 = arith.constant 0 : i32
    %c0_i32_0 = arith.constant 0 : i32
    %c0_i32_1 = arith.constant 0 : i32
    return %c0_i32, %c0_i32_0 : i32, i32
  }
  func.func @transform_5(%arg0: i32) -> (i32, i32, i32) {
    %c0_i32 = arith.constant 0 : i32
    %c0_i32_0 = arith.constant 0 : i32
    %c0_i32_1 = arith.constant 0 : i32
    %c0_i32_2 = arith.constant 0 : i32
    return %c0_i32, %c0_i32_0, %c0_i32_1 : i32, i32, i32
  }
  func.func @transform_6(%arg0: i32) -> (i32, i32, i32) {
    %c0_i32 = arith.constant 0 : i32
    %c0_i32_0 = arith.constant 0 : i32
    %c0_i32_1 = arith.constant 0 : i32
    %c0_i32_2 = arith.constant 0 : i32
    return %c0_i32, %c0_i32_0, %c0_i32_1 : i32, i32, i32
  }
  func.func @transform_7(%arg0: i32) -> (i32, i32, i32) {
    %c0_i32 = arith.constant 0 : i32
    %c0_i32_0 = arith.constant 0 : i32
    %c0_i32_1 = arith.constant 0 : i32
    %c0_i32_2 = arith.constant 0 : i32
    return %c0_i32, %c0_i32_0, %c0_i32_1 : i32, i32, i32
  }
  func.func @transform_8(%arg0: i32) -> (i32, i32, i32) {
    %c0_i32 = arith.constant 0 : i32
    %c0_i32_0 = arith.constant 0 : i32
    %c0_i32_1 = arith.constant 0 : i32
    %c0_i32_2 = arith.constant 0 : i32
    return %c0_i32, %c0_i32_0, %c0_i32_1 : i32, i32, i32
  }
  func.func @transform_9(%arg0: i32) -> (i32, i32) {
    %c0_i32 = arith.constant 0 : i32
    %c0_i32_0 = arith.constant 0 : i32
    %c0_i32_1 = arith.constant 0 : i32
    return %c0_i32, %c0_i32_0 : i32, i32
  }
  func.func @transform_10(%arg0: i32) -> (i32, i32) {
    %c0_i32 = arith.constant 0 : i32
    %c0_i32_0 = arith.constant 0 : i32
    %c0_i32_1 = arith.constant 0 : i32
    return %c0_i32, %c0_i32_0 : i32, i32
  }
  func.func @transform_11(%arg0: i32) -> (i32, i32) {
    %c0_i32 = arith.constant 0 : i32
    %c0_i32_0 = arith.constant 0 : i32
    return %c0_i32, %arg0 : i32, i32
  }
}

</mosaic_0001>

<llo_original>
// kernel: tpu_custom_call.1
$region0: #{tpu_custom_call.1}
  #allocation0 [shape = 'u32[]', space=smem, size = 0x4, offset = 0x4, fixed_abs, tag = 'smem constant byte address 0x4 - core index']
  #allocation1 [shape = 'u32[72,128]{1,0:T(1,128)}', space=vmem, size = 0x9000, scoped, tag = 'internal scratch']
  %s0 = inlined_call_operand.vmem [shape: bf16[32,512], index: 0, kind: input, shape index: {}]
  %s1 = inlined_call_operand.vmem [shape: f32[1,512], index: 1, kind: input, shape index: {}]
  %s2 = inlined_call_operand.vmem [shape: f32[6,256], index: 2, kind: input, shape index: {}]
  %s3 = inlined_call_operand.vmem [shape: bf16[64,32], index: 3, kind: input, shape index: {}]
  %s4 = inlined_call_operand.vmem [shape: f32[64,1], index: 4, kind: input, shape index: {}]
  %s5 = inlined_call_operand.vmem [shape: bf16[3,192,64], index: 5, kind: input, shape index: {}]
  %s6 = inlined_call_operand.vmem [shape: f32[3,64,1], index: 6, kind: input, shape index: {}]
  %s7 = inlined_call_operand.vmem [shape: bf16[3,64,64], index: 7, kind: input, shape index: {}]
  %s8 = inlined_call_operand.vmem [shape: f32[3,64,1], index: 8, kind: input, shape index: {}]
  %s9 = inlined_call_operand.vmem [shape: bf16[8,64], index: 9, kind: input, shape index: {}]
  %s10 = inlined_call_operand.vmem [shape: f32[8,1], index: 10, kind: input, shape index: {}]
  %s11 = inlined_call_operand.hbm [shape: f32[8,512], index: 11, kind: output, shape index: {}]
  %s12 = sld [smem:[#allocation0]]
  $region115: #{tpu_custom_call.1} parent=0
    _
  %s14 = ssub.s32 1, %s12
  %s15 = scalar_select 0, %s14, %s12
  $region1: #{tpu_custom_call.1} parent=0
    #allocation2 [shape = 'u8[32768]{0}', space=vmem, size = 0x8000, scoped, tag = 'input window, operand 0']
    #allocation3 [shape = 'u8[16384]{0}', space=vmem, size = 0x4000, scoped, tag = 'output window, operand 0']
    #allocation4 [shape = 's32[2]{0}', space=sflag, size = 0x8, scoped, tag = 'scoped memory for tpu_custom_call.1']
    %16 = vsyncpa [#allocation4], 0
    %s17 = scalar_lea.sflag [#allocation4], 1
    %18 = vsyncpa %s17, 0
    loop: start=0, step=1, limit=4
    $region2: #{tpu_custom_call.1} parent=1 // loop_pre_header
      _
    $region3: #{tpu_custom_call.1} parent=1 // loop_header
      %s20 = sphi 0, %s24
      %p21 = scmp.ge.s32.totalorder %s20, 4
      %s30 = sphi 0, %s32
      %s33 = sphi 0, %s30
      %s34 = sphi 0, %s33
      %s50 = sphi 0, %s34
      %s56 = sphi 0, %s58
      %s59 = sphi 0, %s56
      %s60 = sphi 0, %s59
      %s76 = sphi 0, %s60
      %s80 = sphi 0, %s80
      %s82 = sphi 0, %s80
      %s83 = sphi 0, %s82
      %s97 = sphi 0, %s83
      %s101 = sphi 0, %s101
      %s103 = sphi 0, %s101
      %s104 = sphi 0, %s103
      %s118 = sphi 0, %s104
      %s122 = sphi 0, %s122
      %s124 = sphi 0, %s122
      %s125 = sphi 0, %s124
      %s139 = sphi 0, %s125
      %s143 = sphi 0, %s143
      %s145 = sphi 0, %s143
      %s146 = sphi 0, %s145
      %s160 = sphi 0, %s146
      %s164 = sphi 0, %s164
      %s166 = sphi 0, %s164
      %s167 = sphi 0, %s166
      %s181 = sphi 0, %s167
      %s185 = sphi 0, %s185
      %s187 = sphi 0, %s185
      %s188 = sphi 0, %s187
      %s202 = sphi 0, %s188
      %s206 = sphi 0, %s206
      %s208 = sphi 0, %s206
      %s209 = sphi 0, %s208
      %s223 = sphi 0, %s209
      %s227 = sphi 0, %s227
      %s229 = sphi 0, %s227
      %s230 = sphi 0, %s229
      %s244 = sphi 0, %s230
      %s248 = sphi 0, %s248
      %s250 = sphi 0, %s248
      %s251 = sphi 0, %s250
      %s265 = sphi 0, %s251
      %s271 = sphi 0, %s273
      %s274 = sphi 0, %s271
      %s275 = sphi 0, %s274
      %s291 = sphi 0, %s275
    $region4: #{tpu_custom_call.1} parent=1 // loop_header_branch
      %23 = sbr.rel (%p21) target = $region8
    $region5: #{tpu_custom_call.1} parent=1 // loop_body
      %s25 = ssub.s32 %s20, 1
      %s26 = ssub.s32 %s20, 2
      %s27 = sadd.s32 %s20, 1
      %s28 = ssub.s32 %s20, %s27
      %p29 = scmp.eq.s32.totalorder %s28, 0
      %s31 = sadd.s32 %s30, 1
      %s32 = scalar_select %p29, %s30, %s31
      %p35 = pneg %p29
      %p36 = scmp.eq.s32.totalorder %s20, 1
      %p37 = por %p35, %p36
      %p38 = scmp.ne.s32.totalorder %s30, %s33
      %p39 = scmp.eq.s32.totalorder %s20, 0
      %p40 = por %p38, %p39
      %p41 = scmp.ne.s32.totalorder %s30, %s33
      %p42 = scmp.eq.s32.totalorder %s25, 1
      %p43 = por %p41, %p42
      %p44 = scmp.ne.s32.totalorder %s33, %s34
      %p45 = scmp.eq.s32.totalorder %s25, 0
      %p46 = por %p44, %p45
      %p47 = scmp.ne.s32.totalorder %s33, %s34
      %p48 = scmp.eq.s32.totalorder %s26, 1
      %p49 = por %p47, %p48
      %p51 = scmp.ne.s32.totalorder %s34, %s50
      %p52 = scmp.eq.s32.totalorder %s26, 0
      %p53 = por %p51, %p52
      %s54 = ssub.s32 %s20, %s27
      %p55 = scmp.eq.s32.totalorder %s54, 0
      %s57 = sadd.s32 %s56, 1
      %s58 = scalar_select %p55, %s56, %s57
      %p61 = pneg %p55
      %p62 = scmp.eq.s32.totalorder %s20, 1
      %p63 = por %p61, %p62
      %p64 = scmp.ne.s32.totalorder %s56, %s59
      %p65 = scmp.eq.s32.totalorder %s20, 0
      %p66 = por %p64, %p65
      %p67 = scmp.ne.s32.totalorder %s56, %s59
      %p68 = scmp.eq.s32.totalorder %s25, 1
      %p69 = por %p67, %p68
      %p70 = scmp.ne.s32.totalorder %s59, %s60
      %p71 = scmp.eq.s32.totalorder %s25, 0
      %p72 = por %p70, %p71
      %p73 = scmp.ne.s32.totalorder %s59, %s60
      %p74 = scmp.eq.s32.totalorder %s26, 1
      %p75 = por %p73, %p74
      %p77 = scmp.ne.s32.totalorder %s60, %s76
      %p78 = scmp.eq.s32.totalorder %s26, 0
      %p79 = por %p77, %p78
      %s81 = sadd.s32 %s80, 1
      %p84 = scmp.eq.s32.totalorder %s20, 1
      %p85 = scmp.ne.s32.totalorder %s80, %s82
      %p86 = scmp.eq.s32.totalorder %s20, 0
      %p87 = por %p85, %p86
      %p88 = scmp.ne.s32.totalorder %s80, %s82
      %p89 = scmp.eq.s32.totalorder %s25, 1
      %p90 = por %p88, %p89
      %p91 = scmp.ne.s32.totalorder %s82, %s83
      %p92 = scmp.eq.s32.totalorder %s25, 0
      %p93 = por %p91, %p92
      %p94 = scmp.ne.s32.totalorder %s82, %s83
      %p95 = scmp.eq.s32.totalorder %s26, 1
      %p96 = por %p94, %p95
      %p98 = scmp.ne.s32.totalorder %s83, %s97
      %p99 = scmp.eq.s32.totalorder %s26, 0
      %p100 = por %p98, %p99
      %s102 = sadd.s32 %s101, 1
      %p105 = scmp.eq.s32.totalorder %s20, 1
      %p106 = scmp.ne.s32.totalorder %s101, %s103
      %p107 = scmp.eq.s32.totalorder %s20, 0
      %p108 = por %p106, %p107
      %p109 = scmp.ne.s32.totalorder %s101, %s103
      %p110 = scmp.eq.s32.totalorder %s25, 1
      %p111 = por %p109, %p110
      %p112 = scmp.ne.s32.totalorder %s103, %s104
      %p113 = scmp.eq.s32.totalorder %s25, 0
      %p114 = por %p112, %p113
      %p115 = scmp.ne.s32.totalorder %s103, %s104
      %p116 = scmp.eq.s32.totalorder %s26, 1
      %p117 = por %p115, %p116
      %p119 = scmp.ne.s32.totalorder %s104, %s118
      %p120 = scmp.eq.s32.totalorder %s26, 0
      %p121 = por %p119, %p120
      %s123 = sadd.s32 %s122, 1
      %p126 = scmp.eq.s32.totalorder %s20, 1
      %p127 = scmp.ne.s32.totalorder %s122, %s124
      %p128 = scmp.eq.s32.totalorder %s20, 0
      %p129 = por %p127, %p128
      %p130 = scmp.ne.s32.totalorder %s122, %s124
      %p131 = scmp.eq.s32.totalorder %s25, 1
      %p132 = por %p130, %p131
      %p133 = scmp.ne.s32.totalorder %s124, %s125
      %p134 = scmp.eq.s32.totalorder %s25, 0
      %p135 = por %p133, %p134
      %p136 = scmp.ne.s32.totalorder %s124, %s125
      %p137 = scmp.eq.s32.totalorder %s26, 1
      %p138 = por %p136, %p137
      %p140 = scmp.ne.s32.totalorder %s125, %s139
      %p141 = scmp.eq.s32.totalorder %s26, 0
      %p142 = por %p140, %p141
      %s144 = sadd.s32 %s143, 1
      %p147 = scmp.eq.s32.totalorder %s20, 1
      %p148 = scmp.ne.s32.totalorder %s143, %s145
      %p149 = scmp.eq.s32.totalorder %s20, 0
      %p150 = por %p148, %p149
      %p151 = scmp.ne.s32.totalorder %s143, %s145
      %p152 = scmp.eq.s32.totalorder %s25, 1
      %p153 = por %p151, %p152
      %p154 = scmp.ne.s32.totalorder %s145, %s146
      %p155 = scmp.eq.s32.totalorder %s25, 0
      %p156 = por %p154, %p155
      %p157 = scmp.ne.s32.totalorder %s145, %s146
      %p158 = scmp.eq.s32.totalorder %s26, 1
      %p159 = por %p157, %p158
      %p161 = scmp.ne.s32.totalorder %s146, %s160
      %p162 = scmp.eq.s32.totalorder %s26, 0
      %p163 = por %p161, %p162
      %s165 = sadd.s32 %s164, 1
      %p168 = scmp.eq.s32.totalorder %s20, 1
      %p169 = scmp.ne.s32.totalorder %s164, %s166
      %p170 = scmp.eq.s32.totalorder %s20, 0
      %p171 = por %p169, %p170
      %p172 = scmp.ne.s32.totalorder %s164, %s166
      %p173 = scmp.eq.s32.totalorder %s25, 1
      %p174 = por %p172, %p173
      %p175 = scmp.ne.s32.totalorder %s166, %s167
      %p176 = scmp.eq.s32.totalorder %s25, 0
      %p177 = por %p175, %p176
      %p178 = scmp.ne.s32.totalorder %s166, %s167
      %p179 = scmp.eq.s32.totalorder %s26, 1
      %p180 = por %p178, %p179
      %p182 = scmp.ne.s32.totalorder %s167, %s181
      %p183 = scmp.eq.s32.totalorder %s26, 0
      %p184 = por %p182, %p183
      %s186 = sadd.s32 %s185, 1
      %p189 = scmp.eq.s32.totalorder %s20, 1
      %p190 = scmp.ne.s32.totalorder %s185, %s187
      %p191 = scmp.eq.s32.totalorder %s20, 0
      %p192 = por %p190, %p191
      %p193 = scmp.ne.s32.totalorder %s185, %s187
      %p194 = scmp.eq.s32.totalorder %s25, 1
      %p195 = por %p193, %p194
      %p196 = scmp.ne.s32.totalorder %s187, %s188
      %p197 = scmp.eq.s32.totalorder %s25, 0
      %p198 = por %p196, %p197
      %p199 = scmp.ne.s32.totalorder %s187, %s188
      %p200 = scmp.eq.s32.totalorder %s26, 1
      %p201 = por %p199, %p200
      %p203 = scmp.ne.s32.totalorder %s188, %s202
      %p204 = scmp.eq.s32.totalorder %s26, 0
      %p205 = por %p203, %p204
      %s207 = sadd.s32 %s206, 1
      %p210 = scmp.eq.s32.totalorder %s20, 1
      %p211 = scmp.ne.s32.totalorder %s206, %s208
      %p212 = scmp.eq.s32.totalorder %s20, 0
      %p213 = por %p211, %p212
      %p214 = scmp.ne.s32.totalorder %s206, %s208
      %p215 = scmp.eq.s32.totalorder %s25, 1
      %p216 = por %p214, %p215
      %p217 = scmp.ne.s32.totalorder %s208, %s209
      %p218 = scmp.eq.s32.totalorder %s25, 0
      %p219 = por %p217, %p218
      %p220 = scmp.ne.s32.totalorder %s208, %s209
      %p221 = scmp.eq.s32.totalorder %s26, 1
      %p222 = por %p220, %p221
      %p224 = scmp.ne.s32.totalorder %s209, %s223
      %p225 = scmp.eq.s32.totalorder %s26, 0
      %p226 = por %p224, %p225
      %s228 = sadd.s32 %s227, 1
      %p231 = scmp.eq.s32.totalorder %s20, 1
      %p232 = scmp.ne.s32.totalorder %s227, %s229
      %p233 = scmp.eq.s32.totalorder %s20, 0
      %p234 = por %p232, %p233
      %p235 = scmp.ne.s32.totalorder %s227, %s229
      %p236 = scmp.eq.s32.totalorder %s25, 1
      %p237 = por %p235, %p236
      %p238 = scmp.ne.s32.totalorder %s229, %s230
      %p239 = scmp.eq.s32.totalorder %s25, 0
      %p240 = por %p238, %p239
      %p241 = scmp.ne.s32.totalorder %s229, %s230
      %p242 = scmp.eq.s32.totalorder %s26, 1
      %p243 = por %p241, %p242
      %p245 = scmp.ne.s32.totalorder %s230, %s244
      %p246 = scmp.eq.s32.totalorder %s26, 0
      %p247 = por %p245, %p246
      %s249 = sadd.s32 %s248, 1
      %p252 = scmp.eq.s32.totalorder %s20, 1
      %p253 = scmp.ne.s32.totalorder %s248, %s250
      %p254 = scmp.eq.s32.totalorder %s20, 0
      %p255 = por %p253, %p254
      %p256 = scmp.ne.s32.totalorder %s248, %s250
      %p257 = scmp.eq.s32.totalorder %s25, 1
      %p258 = por %p256, %p257
      %p259 = scmp.ne.s32.totalorder %s250, %s251
      %p260 = scmp.eq.s32.totalorder %s25, 0
      %p261 = por %p259, %p260
      %p262 = scmp.ne.s32.totalorder %s250, %s251
      %p263 = scmp.eq.s32.totalorder %s26, 1
      %p264 = por %p262, %p263
      %p266 = scmp.ne.s32.totalorder %s251, %s265
      %p267 = scmp.eq.s32.totalorder %s26, 0
      %p268 = por %p266, %p267
      %s269 = ssub.s32 %s20, %s27
      %p270 = scmp.eq.s32.totalorder %s269, 0
      %s272 = sadd.s32 %s271, 1
      %s273 = scalar_select %p270, %s271, %s272
      %p276 = pneg %p270
      %p277 = scmp.eq.s32.totalorder %s20, 1
      %p278 = por %p276, %p277
      %p279 = scmp.ne.s32.totalorder %s271, %s274
      %p280 = scmp.eq.s32.totalorder %s20, 0
      %p281 = por %p279, %p280
      %p282 = scmp.ne.s32.totalorder %s271, %s274
      %p283 = scmp.eq.s32.totalorder %s25, 1
      %p284 = por %p282, %p283
      %p285 = scmp.ne.s32.totalorder %s274, %s275
      %p286 = scmp.eq.s32.totalorder %s25, 0
      %p287 = por %p285, %p286
      %p288 = scmp.ne.s32.totalorder %s274, %s275
      %p289 = scmp.eq.s32.totalorder %s26, 1
      %p290 = por %p288, %p289
      %p292 = scmp.ne.s32.totalorder %s275, %s291
      %p293 = scmp.eq.s32.totalorder %s26, 0
      %p294 = por %p292, %p293
      %p295 = scmp.le.s32.totalorder 1, %s20
      %p296 = scmp.lt.s32.totalorder %s20, 3
      %p297 = pnand %p295, %p296
      %p298 = pneg %p297
      // Predicated region
      $region9: #{tpu_custom_call.1} parent=5 // pred_check
        _
      $region10: #{tpu_custom_call.1} parent=5 // pred_check_branch
        %300 = sbr.rel (%p297) target = $region12
      $region11: #{tpu_custom_call.1} parent=5 // pred_region
        %s301 = ssub.s32 %s20, 1
        // Predicated region
        $region13: #{tpu_custom_call.1} parent=11 // pred_check
          %p302 = pneg %p93
        $region14: #{tpu_custom_call.1} parent=11 // pred_check_branch
          %304 = sbr.rel (%p302) target = $region16
        $region15: #{tpu_custom_call.1} parent=11 // pred_region
          _
        $region16: #{tpu_custom_call.1} parent=11 // pred_fallthru
          _
        // Predicated region
        $region17: #{tpu_custom_call.1} parent=11 // pred_check
          %p305 = pneg %p114
        $region18: #{tpu_custom_call.1} parent=11 // pred_check_branch
          %307 = sbr.rel (%p305) target = $region20
        $region19: #{tpu_custom_call.1} parent=11 // pred_region
          _
        $region20: #{tpu_custom_call.1} parent=11 // pred_fallthru
          _
        // Predicated region
        $region21: #{tpu_custom_call.1} parent=11 // pred_check
          %p308 = pneg %p135
        $region22: #{tpu_custom_call.1} parent=11 // pred_check_branch
          %310 = sbr.rel (%p308) target = $region24
        $region23: #{tpu_custom_call.1} parent=11 // pred_region
          _
        $region24: #{tpu_custom_call.1} parent=11 // pred_fallthru
          _
        // Predicated region
        $region25: #{tpu_custom_call.1} parent=11 // pred_check
          %p311 = pneg %p156
        $region26: #{tpu_custom_call.1} parent=11 // pred_check_branch
          %313 = sbr.rel (%p311) target = $region28
        $region27: #{tpu_custom_call.1} parent=11 // pred_region
          _
        $region28: #{tpu_custom_call.1} parent=11 // pred_fallthru
          _
        // Predicated region
        $region29: #{tpu_custom_call.1} parent=11 // pred_check
          %p314 = pneg %p177
        $region30: #{tpu_custom_call.1} parent=11 // pred_check_branch
          %316 = sbr.rel (%p314) target = $region32
        $region31: #{tpu_custom_call.1} parent=11 // pred_region
          _
        $region32: #{tpu_custom_call.1} parent=11 // pred_fallthru
          _
        // Predicated region
        $region33: #{tpu_custom_call.1} parent=11 // pred_check
          %p317 = pneg %p198
        $region34: #{tpu_custom_call.1} parent=11 // pred_check_branch
          %319 = sbr.rel (%p317) target = $region36
        $region35: #{tpu_custom_call.1} parent=11 // pred_region
          _
        $region36: #{tpu_custom_call.1} parent=11 // pred_fallthru
          _
        // Predicated region
        $region37: #{tpu_custom_call.1} parent=11 // pred_check
          %p320 = pneg %p219
        $region38: #{tpu_custom_call.1} parent=11 // pred_check_branch
          %322 = sbr.rel (%p320) target = $region40
        $region39: #{tpu_custom_call.1} parent=11 // pred_region
          _
        $region40: #{tpu_custom_call.1} parent=11 // pred_fallthru
          _
        // Predicated region
        $region41: #{tpu_custom_call.1} parent=11 // pred_check
          %p323 = pneg %p240
        $region42: #{tpu_custom_call.1} parent=11 // pred_check_branch
          %325 = sbr.rel (%p323) target = $region44
        $region43: #{tpu_custom_call.1} parent=11 // pred_region
          _
        $region44: #{tpu_custom_call.1} parent=11 // pred_fallthru
          _
        // Predicated region
        $region45: #{tpu_custom_call.1} parent=11 // pred_check
          %p326 = pneg %p261
        $region46: #{tpu_custom_call.1} parent=11 // pred_check_branch
          %328 = sbr.rel (%p326) target = $region48
        $region47: #{tpu_custom_call.1} parent=11 // pred_region
          _
        $region48: #{tpu_custom_call.1} parent=11 // pred_fallthru
          _
      $region12: #{tpu_custom_call.1} parent=5 // pred_fallthru
        _
      %p329 = scmp.lt.s32.totalorder %s20, 2
      // Predicated region
      $region49: #{tpu_custom_call.1} parent=5 // pred_check
        %p330 = pneg %p329
      $region50: #{tpu_custom_call.1} parent=5 // pred_check_branch
        %332 = sbr.rel (%p330) target = $region52
      $region51: #{tpu_custom_call.1} parent=5 // pred_region
        // Predicated region
        $region53: #{tpu_custom_call.1} parent=51 // pred_check
          %p333 = pneg %p40
        $region54: #{tpu_custom_call.1} parent=51 // pred_check_branch
          %335 = sbr.rel (%p333) target = $region56
        $region55: #{tpu_custom_call.1} parent=51 // pred_region
          %s336 = sand.u32 %s30, 1
          %s337 = sand.u32 %s30, 1
          %s338 = smul.addr %s337, 32
          %s339 = scalar_lea.vmem [#allocation2], %s338
          %s340 = smul.u32 2, %s20
          %s341 = smul.addr %s340, 4
          %s342 = scalar_lea.vmem %s0, %s341
          // Predicated region
          $region57: #{tpu_custom_call.1} parent=55 // pred_check
            _
          $region58: #{tpu_custom_call.1} parent=55 // pred_check_branch
            %344 = sbr.rel (0) target = $region60
          $region59: #{tpu_custom_call.1} parent=55 // pred_region
            // Predicated region
            $region61: #{tpu_custom_call.1} parent=59 // pred_check
              _
            $region62: #{tpu_custom_call.1} parent=59 // pred_check_branch
              %346 = sbr.rel (0) target = $region64
            $region63: #{tpu_custom_call.1} parent=59 // pred_region
              // Predicated region
              $region76: #{tpu_custom_call.1} parent=63 // pred_check
                _
              $region77: #{tpu_custom_call.1} parent=63 // pred_check_branch
                %368 = sbr.rel (0) target = $region79
              $region78: #{tpu_custom_call.1} parent=63 // pred_region
                loop: start=0, step=1, limit=1
                $region80: #{tpu_custom_call.1} parent=78 // loop_pre_header
                  _
                $region81: #{tpu_custom_call.1} parent=78 // loop_header
                  %s370 = sphi 0, %s374
                  %p371 = scmp.ge.s32.totalorder %s370, 1
                  %s375 = sphi %s342, %s342
                  %s376 = sphi %s339, %s339
                $region82: #{tpu_custom_call.1} parent=78 // loop_header_branch
                  %373 = sbr.rel (%p371) target = $region86
                $region83: #{tpu_custom_call.1} parent=78 // loop_body
                  %v377 = vld [vmem:[%s375] sm:$0xff]
                  %378 = vst [vmem:[%s376] sm:$0xff] %v377
                  %v379 = vld [vmem:[%s375 + $0x10] sm:$0xff]
                  %380 = vst [vmem:[%s376 + $0x8] sm:$0xff] %v379
                  %v381 = vld [vmem:[%s375 + $0x20] sm:$0xff]
                  %382 = vst [vmem:[%s376 + $0x10] sm:$0xff] %v381
                  %v383 = vld [vmem:[%s375 + $0x30] sm:$0xff]
                  %384 = vst [vmem:[%s376 + $0x18] sm:$0xff] %v383
                $region84: #{tpu_custom_call.1} parent=78 // loop_footer
                  %s374 = sadd.s32 1, %s370
                $region85: #{tpu_custom_call.1} parent=78 // loop_footer_branch
                  %369 = sbr.rel target = $region81
                $region86: #{tpu_custom_call.1} parent=78 // loop_exit
                  _
              $region79: #{tpu_custom_call.1} parent=63 // pred_fallthru
                _
              // Predicated region
              $region87: #{tpu_custom_call.1} parent=63 // pred_check
                _
              $region88: #{tpu_custom_call.1} parent=63 // pred_check_branch
                %386 = sbr.rel target = $region90
              $region89: #{tpu_custom_call.1} parent=63 // pred_region
                _
              $region90: #{tpu_custom_call.1} parent=63 // pred_fallthru
                _
            $region64: #{tpu_custom_call.1} parent=59 // pred_fallthru
              _
            // Predicated region
            $region65: #{tpu_custom_call.1} parent=59 // pred_check
              _
            $region66: #{tpu_custom_call.1} parent=59 // pred_check_branch
              %348 = sbr.rel target = $region68
            $region67: #{tpu_custom_call.1} parent=59 // pred_region
              %s350 = ssub.s32 256, 1
              loop: start=0, step=1, limit=1
              $region69: #{tpu_custom_call.1} parent=67 // loop_pre_header
                _
              $region70: #{tpu_custom_call.1} parent=67 // loop_header
                %s352 = sphi 0, %s356
                %p353 = scmp.ge.s32.totalorder %s352, 1
                %s357 = sphi %s342, %s342
                %s358 = sphi %s339, %s339
              $region71: #{tpu_custom_call.1} parent=67 // loop_header_branch
                %355 = sbr.rel (%p353) target = $region75
              $region72: #{tpu_custom_call.1} parent=67 // loop_body
                %v359 = vld [vmem:[%s357] sm:%s350]
                %360 = vst [vmem:[%s358] sm:%s350] %v359
                %v361 = vld [vmem:[%s357 + $0x10] sm:%s350]
                %362 = vst [vmem:[%s358 + $0x8] sm:%s350] %v361
                %v363 = vld [vmem:[%s357 + $0x20] sm:%s350]
                %364 = vst [vmem:[%s358 + $0x10] sm:%s350] %v363
                %v365 = vld [vmem:[%s357 + $0x30] sm:%s350]
                %366 = vst [vmem:[%s358 + $0x18] sm:%s350] %v365
              $region73: #{tpu_custom_call.1} parent=67 // loop_footer
                %s356 = sadd.s32 1, %s352
              $region74: #{tpu_custom_call.1} parent=67 // loop_footer_branch
                %351 = sbr.rel target = $region70
              $region75: #{tpu_custom_call.1} parent=67 // loop_exit
                _
            $region68: #{tpu_custom_call.1} parent=59 // pred_fallthru
              _
          $region60: #{tpu_custom_call.1} parent=55 // pred_fallthru
            _
          %387 = vnop
        $region56: #{tpu_custom_call.1} parent=51 // pred_fallthru
          _
        // Predicated region
        $region91: #{tpu_custom_call.1} parent=51 // pred_check
          %p388 = pneg %p66
        $region92: #{tpu_custom_call.1} parent=51 // pred_check_branch
          %390 = sbr.rel (%p388) target = $region94
        $region93: #{tpu_custom_call.1} parent=51 // pred_region
          %s391 = smul.u32 2, %s20
          %p392 = scmp.lt.s32.totalorder %s391, 3
          %s393 = scalar_select %p392, %s391, 3
          %s394 = scalar_lea.vmem %s1, %s393
          %s395 = smul.u32 2, %s20
        $region94: #{tpu_custom_call.1} parent=51 // pred_fallthru
          _
      $region52: #{tpu_custom_call.1} parent=5 // pred_fallthru
        _
      %p396 = scmp.le.s32.totalorder 1, %s20
      %p397 = scmp.lt.s32.totalorder %s20, 3
      %p398 = pnand %p396, %p397
      %p399 = pneg %p398
      // Predicated region
      $region95: #{tpu_custom_call.1} parent=5 // pred_check
        _
      $region96: #{tpu_custom_call.1} parent=5 // pred_check_branch
        %401 = sbr.rel (%p398) target = $region98
      $region97: #{tpu_custom_call.1} parent=5 // pred_region
        %s402 = ssub.s32 %s20, 1
        %s403 = sand.u32 %s33, 1
        %s404 = sand.u32 %s33, 1
        %s405 = smul.addr %s404, 32
        %s406 = scalar_lea.vmem [#allocation2], %s405
        // Predicated region
        $region99: #{tpu_custom_call.1} parent=97 // pred_check
          %p407 = pneg %p46
        $region100: #{tpu_custom_call.1} parent=97 // pred_check_branch
          %409 = sbr.rel (%p407) target = $region102
        $region101: #{tpu_custom_call.1} parent=97 // pred_region
          _
        $region102: #{tpu_custom_call.1} parent=97 // pred_fallthru
          _
        %s410 = sand.u32 %s33, 1
        %s411 = sand.u32 %s33, 1
        %s412 = smul.addr %s411, 32
        %s413 = scalar_lea.vmem [#allocation2], %s412
        %p414 = pneg %p46
        %p415 = pneg %p43
        %s416 = smul.u32 2, %s25
        %p417 = scmp.lt.s32.totalorder %s416, 3
        %s418 = scalar_select %p417, %s416, 3
        %s419 = scalar_lea.vmem %s1, %s418
        %p420 = pneg %p72
        %p421 = pneg %p69
        %p422 = pneg %p93
        %p423 = pneg %p90
        %p424 = pneg %p114
        %p425 = pneg %p111
        %p426 = pneg %p135
        %p427 = pneg %p132
        %p428 = pneg %p156
        %p429 = pneg %p153
        %p430 = pneg %p177
        %p431 = pneg %p174
        %p432 = pneg %p198
        %p433 = pneg %p195
        %p434 = pneg %p219
        %p435 = pneg %p216
        %p436 = pneg %p240
        %p437 = pneg %p237
        %p438 = pneg %p261
        %p439 = pneg %p258
        %p440 = pneg %p287
        %p441 = pneg %p284
        %s442 = sand.u32 %s274, 1
        %s443 = scalar_lea.sflag [#allocation4], %s442
        %s444 = sand.u32 %s274, 1
        %s445 = smul.addr %s444, 16
        %s446 = scalar_lea.vmem [#allocation3], %s445
        %s447 = smul.u32 2, %s25
        %s448 = smul.u32 2, %s25
        %p449 = scmp.lt.s32.totalorder %s448, 3
        %s450 = scalar_select %p449, %s448, 3
        %s451 = scalar_lea.vmem %s1, %s450
        %s452 = smul.u32 2, %s25
        %s453 = smul.u32 2, %s25
        %v455 = vld [vmem:[%s406] sm:$0xff]
        %v456 = vld [vmem:[%s406 + $0x8] sm:$0xff]
        %v457 = vld [vmem:[%s406 + $0x10] sm:$0xff]
        %v458 = vld [vmem:[%s406 + $0x18] sm:$0xff]
        %v459 = vld [vmem:[%s451] sm:$0x3]
        %v460 = vld [vmem:[%s3] sm:$0xf]
        %v461 = vld [vmem:[%s3 + $0x4] sm:$0xf]
        %v462 = vld [vmem:[%s3 + $0x8] sm:$0xf]
        %v463 = vld [vmem:[%s3 + $0xc] sm:$0xf]
        %v464 = vld [vmem:[%s3 + $0x10] sm:$0xf]
        %v465 = vld [vmem:[%s3 + $0x14] sm:$0xf]
        %v466 = vld [vmem:[%s3 + $0x18] sm:$0xf]
        %v467 = vld [vmem:[%s3 + $0x1c] sm:$0xf]
        %v468 = vld [vmem:[%s4] sm:$0xff]
        %v469 = vld [vmem:[%s4 + $0x8] sm:$0xff]
        %v470 = vld [vmem:[%s4 + $0x10] sm:$0xff]
        %v471 = vld [vmem:[%s4 + $0x18] sm:$0xff]
        %v472 = vld [vmem:[%s4 + $0x20] sm:$0xff]
        %v473 = vld [vmem:[%s4 + $0x28] sm:$0xff]
        %v474 = vld [vmem:[%s4 + $0x30] sm:$0xff]
        %v475 = vld [vmem:[%s4 + $0x38] sm:$0xff]
        %477 = vset.pattern.permute.xlu0 0
        %478 = vperm.xlu0 %477, %v468
        %v479 = vpop.permute.xlu0 %478
        %482 = vset.pattern.permute.xlu0 0
        %483 = vperm.xlu0 %482, %v469
        %v484 = vpop.permute.xlu0 %483
        %487 = vset.pattern.permute.xlu0 0
        %488 = vperm.xlu0 %487, %v470
        %v489 = vpop.permute.xlu0 %488
        %492 = vset.pattern.permute.xlu0 0
        %493 = vperm.xlu0 %492, %v471
        %v494 = vpop.permute.xlu0 %493
        %497 = vset.pattern.permute.xlu0 0
        %498 = vperm.xlu0 %497, %v472
        %v499 = vpop.permute.xlu0 %498
        %502 = vset.pattern.permute.xlu0 0
        %503 = vperm.xlu0 %502, %v473
        %v504 = vpop.permute.xlu0 %503
        %507 = vset.pattern.permute.xlu0 0
        %508 = vperm.xlu0 %507, %v474
        %v509 = vpop.permute.xlu0 %508
        %512 = vset.pattern.permute.xlu0 0
        %513 = vperm.xlu0 %512, %v475
        %v514 = vpop.permute.xlu0 %513
        %v524 = vunpack.c.l.b16 %v460
        %v525 = vunpack.c.l.b16 %v461
        %v526 = vunpack.c.l.b16 %v462
        %v527 = vunpack.c.l.b16 %v463
        %v528 = vunpack.c.l.b16 %v464
        %v529 = vunpack.c.l.b16 %v465
        %v530 = vunpack.c.l.b16 %v466
        %v531 = vunpack.c.l.b16 %v467
        %v532 = vpack.c.b16 %v525, %v524
        %v533 = vpack.c.b16 %v527, %v526
        %v534 = vpack.c.b16 %v529, %v528
        %v535 = vpack.c.b16 %v531, %v530
        %v540 = vunpack.c.l.b16 %v455
        %v541 = vunpack.c.h.b16 %v455
        %v542 = vunpack.c.l.b16 %v456
        %v543 = vunpack.c.h.b16 %v456
        %v544 = vunpack.c.l.b16 %v457
        %v545 = vunpack.c.h.b16 %v457
        %v546 = vunpack.c.l.b16 %v458
        %v547 = vunpack.c.h.b16 %v458
        %v548 = vpack.c.b16 %v542, %v540
        %v549 = vpack.c.b16 %v543, %v541
        %v550 = vpack.c.b16 %v546, %v544
        %v551 = vpack.c.b16 %v547, %v545
        %vm556 = vcmask 261120
        %v558 = vsel %vm556, %v532, 0
        %v561 = vsel %vm556, %v533, 0
        %v564 = vsel %vm556, %v534, 0
        %v567 = vsel %vm556, %v535, 0
        %569 = vmatpush.bf16.msra.mxu0 0
        %570 = vmatpush.bf16.msra.mxu0 0
        %571 = vmatpush.bf16.msra.mxu0 0
        %572 = vmatpush.bf16.msra.mxu0 0
        %573 = vmatpush.bf16.msra.mxu0 0
        %574 = vmatpush.bf16.msra.mxu0 0
        %575 = vmatpush.bf16.msra.mxu0 %v550
        %576 = vmatpush.bf16.msra.mxu0 %v548
        %577 = vmatmul.bf16.gmra.mxu0 %v558
        %v578 = vpop.f32.mrf.mxu0
        %v579 = vadd.f32 %v479, %v578
        %v580 = vpop.f32.mrf.mxu0
        %v581 = vadd.f32 %v484, %v580
        %582 = vmatmul.bf16.gmra.mxu0 %v561
        %v583 = vpop.f32.mrf.mxu0
        %v584 = vadd.f32 %v489, %v583
        %v585 = vpop.f32.mrf.mxu0
        %v586 = vadd.f32 %v494, %v585
        %587 = vmatmul.bf16.gmra.mxu0 %v564
        %v588 = vpop.f32.mrf.mxu0
        %v589 = vadd.f32 %v499, %v588
        %v590 = vpop.f32.mrf.mxu0
        %v591 = vadd.f32 %v504, %v590
        %592 = vmatmul.bf16.gmra.mxu0 %v567
        %v593 = vpop.f32.mrf.mxu0
        %v594 = vadd.f32 %v509, %v593
        %v595 = vpop.f32.mrf.mxu0
        %v596 = vadd.f32 %v514, %v595
        %597 = vdwg.mxu0
        %598 = vmatpush.bf16.msra.mxu0 0
        %599 = vmatpush.bf16.msra.mxu0 0
        %600 = vmatpush.bf16.msra.mxu0 0
        %601 = vmatpush.bf16.msra.mxu0 0
        %602 = vmatpush.bf16.msra.mxu0 0
        %603 = vmatpush.bf16.msra.mxu0 0
        %604 = vmatpush.bf16.msra.mxu0 %v551
        %605 = vmatpush.bf16.msra.mxu0 %v549
        %606 = vmatmul.bf16.gmra.mxu0 %v558
        %v607 = vpop.f32.mrf.mxu0
        %v608 = vadd.f32 %v479, %v607
        %v609 = vpop.f32.mrf.mxu0
        %v610 = vadd.f32 %v484, %v609
        %611 = vmatmul.bf16.gmra.mxu0 %v561
        %v612 = vpop.f32.mrf.mxu0
        %v613 = vadd.f32 %v489, %v612
        %v614 = vpop.f32.mrf.mxu0
        %v615 = vadd.f32 %v494, %v614
        %616 = vmatmul.bf16.gmra.mxu0 %v564
        %v617 = vpop.f32.mrf.mxu0
        %v618 = vadd.f32 %v499, %v617
        %v619 = vpop.f32.mrf.mxu0
        %v620 = vadd.f32 %v504, %v619
        %621 = vmatmul.bf16.gmra.mxu0 %v567
        %v622 = vpop.f32.mrf.mxu0
        %v623 = vadd.f32 %v509, %v622
        %v624 = vpop.f32.mrf.mxu0
        %v625 = vadd.f32 %v514, %v624
        %626 = vdwg.mxu0
        %v627 = vld [vmem:[%s5] sm:$0xf]
        %v628 = vld [vmem:[%s5 + $0x4] sm:$0xf]
        %v629 = vld [vmem:[%s5 + $0x8] sm:$0xf]
        %v630 = vld [vmem:[%s5 + $0xc] sm:$0xf]
        %v631 = vld [vmem:[%s5 + $0x10] sm:$0xf]
        %v632 = vld [vmem:[%s5 + $0x14] sm:$0xf]
        %v633 = vld [vmem:[%s5 + $0x18] sm:$0xf]
        %v634 = vld [vmem:[%s5 + $0x1c] sm:$0xf]
        %v635 = vld [vmem:[%s5 + $0x20] sm:$0xf]
        %v636 = vld [vmem:[%s5 + $0x24] sm:$0xf]
        %v637 = vld [vmem:[%s5 + $0x28] sm:$0xf]
        %v638 = vld [vmem:[%s5 + $0x2c] sm:$0xf]
        %v639 = vld [vmem:[%s5 + $0x30] sm:$0xf]
        %v640 = vld [vmem:[%s5 + $0x34] sm:$0xf]
        %v641 = vld [vmem:[%s5 + $0x38] sm:$0xf]
        %v642 = vld [vmem:[%s5 + $0x3c] sm:$0xf]
        %v643 = vld [vmem:[%s5 + $0x40] sm:$0xf]
        %v644 = vld [vmem:[%s5 + $0x44] sm:$0xf]
        %v645 = vld [vmem:[%s5 + $0x48] sm:$0xf]
        %v646 = vld [vmem:[%s5 + $0x4c] sm:$0xf]
        %v647 = vld [vmem:[%s5 + $0x50] sm:$0xf]
        %v648 = vld [vmem:[%s5 + $0x54] sm:$0xf]
        %v649 = vld [vmem:[%s5 + $0x58] sm:$0xf]
        %v650 = vld [vmem:[%s5 + $0x5c] sm:$0xf]
        %v651 = vpack.c.bf16 %v581, %v579
        %v652 = vpack.c.bf16 %v610, %v608
        %v653 = vpack.c.bf16 %v586, %v584
        %v654 = vpack.c.bf16 %v615, %v613
        %v655 = vpack.c.bf16 %v591, %v589
        %v656 = vpack.c.bf16 %v620, %v618
        %v657 = vpack.c.bf16 %v596, %v594
        %v658 = vpack.c.bf16 %v625, %v623
        %v683 = vunpack.c.l.b16 %v627
        %v684 = vunpack.c.l.b16 %v628
        %v685 = vunpack.c.l.b16 %v629
        %v686 = vunpack.c.l.b16 %v630
        %v687 = vunpack.c.l.b16 %v631
        %v688 = vunpack.c.l.b16 %v632
        %v689 = vunpack.c.l.b16 %v633
        %v690 = vunpack.c.l.b16 %v634
        %v691 = vunpack.c.l.b16 %v635
        %v692 = vunpack.c.l.b16 %v636
        %v693 = vunpack.c.l.b16 %v637
        %v694 = vunpack.c.l.b16 %v638
        %v695 = vunpack.c.l.b16 %v639
        %v696 = vunpack.c.l.b16 %v640
        %v697 = vunpack.c.l.b16 %v641
        %v698 = vunpack.c.l.b16 %v642
        %v699 = vunpack.c.l.b16 %v643
        %v700 = vunpack.c.l.b16 %v644
        %v701 = vunpack.c.l.b16 %v645
        %v702 = vunpack.c.l.b16 %v646
        %v703 = vunpack.c.l.b16 %v647
        %v704 = vunpack.c.l.b16 %v648
        %v705 = vunpack.c.l.b16 %v649
        %v706 = vunpack.c.l.b16 %v650
        %v707 = vpack.c.b16 %v684, %v683
        %v708 = vpack.c.b16 %v686, %v685
        %v709 = vpack.c.b16 %v688, %v687
        %v710 = vpack.c.b16 %v690, %v689
        %v711 = vpack.c.b16 %v692, %v691
        %v712 = vpack.c.b16 %v694, %v693
        %v713 = vpack.c.b16 %v696, %v695
        %v714 = vpack.c.b16 %v698, %v697
        %v715 = vpack.c.b16 %v700, %v699
        %v716 = vpack.c.b16 %v702, %v701
        %v717 = vpack.c.b16 %v704, %v703
        %v718 = vpack.c.b16 %v706, %v705
        %vm719 = vcmask 523264
        %v721 = vsel %vm719, %v707, 0
        %v724 = vsel %vm719, %v708, 0
        %v727 = vsel %vm719, %v709, 0
        %v730 = vsel %vm719, %v710, 0
        %v733 = vsel %vm719, %v711, 0
        %v736 = vsel %vm719, %v712, 0
        %v739 = vsel %vm719, %v713, 0
        %v742 = vsel %vm719, %v714, 0
        %v745 = vsel %vm719, %v715, 0
        %v748 = vsel %vm719, %v716, 0
        %v751 = vsel %vm719, %v717, 0
        %v754 = vsel %vm719, %v718, 0
        %756 = vmatpush.bf16.msra.mxu0 0
        %757 = vmatpush.bf16.msra.mxu0 0
        %758 = vmatpush.bf16.msra.mxu0 0
        %759 = vmatpush.bf16.msra.mxu0 0
        %760 = vmatpush.bf16.msra.mxu0 %v657
        %761 = vmatpush.bf16.msra.mxu0 %v655
        %762 = vmatpush.bf16.msra.mxu0 %v653
        %763 = vmatpush.bf16.msra.mxu0 %v651
        %764 = vmatmul.bf16.gmra.mxu0 %v721
        %v765 = vpop.f32.mrf.mxu0
        %v766 = vadd.f32 0.0, %v765
        %v767 = vpop.f32.mrf.mxu0
        %v768 = vadd.f32 0.0, %v767
        %769 = vmatmul.bf16.gmra.mxu0 %v724
        %v770 = vpop.f32.mrf.mxu0
        %v771 = vadd.f32 0.0, %v770
        %v772 = vpop.f32.mrf.mxu0
        %v773 = vadd.f32 0.0, %v772
        %774 = vmatmul.bf16.gmra.mxu0 %v727
        %v775 = vpop.f32.mrf.mxu0
        %v776 = vadd.f32 0.0, %v775
        %v777 = vpop.f32.mrf.mxu0
        %v778 = vadd.f32 0.0, %v777
        %779 = vmatmul.bf16.gmra.mxu0 %v730
        %v780 = vpop.f32.mrf.mxu0
        %v781 = vadd.f32 0.0, %v780
        %v782 = vpop.f32.mrf.mxu0
        %v783 = vadd.f32 0.0, %v782
        %784 = vmatmul.bf16.gmra.mxu0 %v733
        %v785 = vpop.f32.mrf.mxu0
        %v786 = vadd.f32 0.0, %v785
        %v787 = vpop.f32.mrf.mxu0
        %v788 = vadd.f32 0.0, %v787
        %789 = vmatmul.bf16.gmra.mxu0 %v736
        %v790 = vpop.f32.mrf.mxu0
        %v791 = vadd.f32 0.0, %v790
        %v792 = vpop.f32.mrf.mxu0
        %v793 = vadd.f32 0.0, %v792
        %794 = vmatmul.bf16.gmra.mxu0 %v739
        %v795 = vpop.f32.mrf.mxu0
        %v796 = vadd.f32 0.0, %v795
        %v797 = vpop.f32.mrf.mxu0
        %v798 = vadd.f32 0.0, %v797
        %799 = vmatmul.bf16.gmra.mxu0 %v742
        %v800 = vpop.f32.mrf.mxu0
        %v801 = vadd.f32 0.0, %v800
        %v802 = vpop.f32.mrf.mxu0
        %v803 = vadd.f32 0.0, %v802
        %804 = vmatmul.bf16.gmra.mxu0 %v745
        %v805 = vpop.f32.mrf.mxu0
        %v806 = vadd.f32 0.0, %v805
        %v807 = vpop.f32.mrf.mxu0
        %v808 = vadd.f32 0.0, %v807
        %809 = vmatmul.bf16.gmra.mxu0 %v748
        %v810 = vpop.f32.mrf.mxu0
        %v811 = vadd.f32 0.0, %v810
        %v812 = vpop.f32.mrf.mxu0
        %v813 = vadd.f32 0.0, %v812
        %814 = vmatmul.bf16.gmra.mxu0 %v751
        %v815 = vpop.f32.mrf.mxu0
        %v816 = vadd.f32 0.0, %v815
        %v817 = vpop.f32.mrf.mxu0
        %v818 = vadd.f32 0.0, %v817
        %819 = vmatmul.bf16.gmra.mxu0 %v754
        %v820 = vpop.f32.mrf.mxu0
        %v821 = vadd.f32 0.0, %v820
        %v822 = vpop.f32.mrf.mxu0
        %v823 = vadd.f32 0.0, %v822
        %824 = vdwg.mxu0
        %825 = vmatpush.bf16.msra.mxu0 0
        %826 = vmatpush.bf16.msra.mxu0 0
        %827 = vmatpush.bf16.msra.mxu0 0
        %828 = vmatpush.bf16.msra.mxu0 0
        %829 = vmatpush.bf16.msra.mxu0 %v658
        %830 = vmatpush.bf16.msra.mxu0 %v656
        %831 = vmatpush.bf16.msra.mxu0 %v654
        %832 = vmatpush.bf16.msra.mxu0 %v652
        %833 = vmatmul.bf16.gmra.mxu0 %v721
        %v834 = vpop.f32.mrf.mxu0
        %v835 = vadd.f32 0.0, %v834
        %v836 = vpop.f32.mrf.mxu0
        %v837 = vadd.f32 0.0, %v836
        %838 = vmatmul.bf16.gmra.mxu0 %v724
        %v839 = vpop.f32.mrf.mxu0
        %v840 = vadd.f32 0.0, %v839
        %v841 = vpop.f32.mrf.mxu0
        %v842 = vadd.f32 0.0, %v841
        %843 = vmatmul.bf16.gmra.mxu0 %v727
        %v844 = vpop.f32.mrf.mxu0
        %v845 = vadd.f32 0.0, %v844
        %v846 = vpop.f32.mrf.mxu0
        %v847 = vadd.f32 0.0, %v846
        %848 = vmatmul.bf16.gmra.mxu0 %v730
        %v849 = vpop.f32.mrf.mxu0
        %v850 = vadd.f32 0.0, %v849
        %v851 = vpop.f32.mrf.mxu0
        %v852 = vadd.f32 0.0, %v851
        %853 = vmatmul.bf16.gmra.mxu0 %v733
        %v854 = vpop.f32.mrf.mxu0
        %v855 = vadd.f32 0.0, %v854
        %v856 = vpop.f32.mrf.mxu0
        %v857 = vadd.f32 0.0, %v856
        %858 = vmatmul.bf16.gmra.mxu0 %v736
        %v859 = vpop.f32.mrf.mxu0
        %v860 = vadd.f32 0.0, %v859
        %v861 = vpop.f32.mrf.mxu0
        %v862 = vadd.f32 0.0, %v861
        %863 = vmatmul.bf16.gmra.mxu0 %v739
        %v864 = vpop.f32.mrf.mxu0
        %v865 = vadd.f32 0.0, %v864
        %v866 = vpop.f32.mrf.mxu0
        %v867 = vadd.f32 0.0, %v866
        %868 = vmatmul.bf16.gmra.mxu0 %v742
        %v869 = vpop.f32.mrf.mxu0
        %v870 = vadd.f32 0.0, %v869
        %v871 = vpop.f32.mrf.mxu0
        %v872 = vadd.f32 0.0, %v871
        %873 = vmatmul.bf16.gmra.mxu0 %v745
        %v874 = vpop.f32.mrf.mxu0
        %v875 = vadd.f32 0.0, %v874
        %v876 = vpop.f32.mrf.mxu0
        %v877 = vadd.f32 0.0, %v876
        %878 = vmatmul.bf16.gmra.mxu0 %v748
        %v879 = vpop.f32.mrf.mxu0
        %v880 = vadd.f32 0.0, %v879
        %v881 = vpop.f32.mrf.mxu0
        %v882 = vadd.f32 0.0, %v881
        %883 = vmatmul.bf16.gmra.mxu0 %v751
        %v884 = vpop.f32.mrf.mxu0
        %v885 = vadd.f32 0.0, %v884
        %v886 = vpop.f32.mrf.mxu0
        %v887 = vadd.f32 0.0, %v886
        %888 = vmatmul.bf16.gmra.mxu0 %v754
        %v889 = vpop.f32.mrf.mxu0
        %v890 = vadd.f32 0.0, %v889
        %v891 = vpop.f32.mrf.mxu0
        %v892 = vadd.f32 0.0, %v891
        %893 = vdwg.mxu0
        %v894 = vld [vmem:[%s2] ss:$8 sm:$0x3]
        %s895 = scalar_lea.vmem %s2, 1
        %v896 = vld [vmem:[%s895] ss:$8 sm:$0x3]
        %897 = vrot.lane.b32.xlu0 %v766, 1
        %v898 = vpop.permute.xlu0 %897
        %899 = vrot.lane.b32.xlu0 %v768, 1
        %v900 = vpop.permute.xlu0 %899
        %901 = vrot.lane.b32.xlu0 %v771, 1
        %v902 = vpop.permute.xlu0 %901
        %903 = vrot.lane.b32.xlu0 %v773, 1
        %v904 = vpop.permute.xlu0 %903
        %905 = vrot.lane.b32.xlu0 %v776, 1
        %v906 = vpop.permute.xlu0 %905
        %907 = vrot.lane.b32.xlu0 %v778, 1
        %v908 = vpop.permute.xlu0 %907
        %909 = vrot.lane.b32.xlu0 %v781, 1
        %v910 = vpop.permute.xlu0 %909
        %911 = vrot.lane.b32.xlu0 %v783, 1
        %v912 = vpop.permute.xlu0 %911
        %913 = vrot.lane.b32.xlu0 %v835, 1
        %v914 = vpop.permute.xlu0 %913
        %915 = vrot.lane.b32.xlu0 %v837, 1
        %v916 = vpop.permute.xlu0 %915
        %917 = vrot.lane.b32.xlu0 %v840, 1
        %v918 = vpop.permute.xlu0 %917
        %919 = vrot.lane.b32.xlu0 %v842, 1
        %v920 = vpop.permute.xlu0 %919
        %921 = vrot.lane.b32.xlu0 %v845, 1
        %v922 = vpop.permute.xlu0 %921
        %923 = vrot.lane.b32.xlu0 %v847, 1
        %v924 = vpop.permute.xlu0 %923
        %925 = vrot.lane.b32.xlu0 %v850, 1
        %v926 = vpop.permute.xlu0 %925
        %927 = vrot.lane.b32.xlu0 %v852, 1
        %v928 = vpop.permute.xlu0 %927
        %v929 = vlaneseq
        %v930 = vand.u32 %v929, 127
        %vm931 = vcmp.lt.s32.totalorder %v930, 1
        %v932 = vsel %vm931, %v898, %v914
        %v933 = vsel %vm931, %v900, %v916
        %v934 = vsel %vm931, %v902, %v918
        %v935 = vsel %vm931, %v904, %v920
        %v936 = vsel %vm931, %v906, %v922
        %v937 = vsel %vm931, %v908, %v924
        %v938 = vsel %vm931, %v910, %v926
        %v939 = vsel %vm931, %v912, %v928
        %v940 = vsel %vm931, %v914, %v898
        %v941 = vsel %vm931, %v916, %v900
        %v942 = vsel %vm931, %v918, %v902
        %v943 = vsel %vm931, %v920, %v904
        %v944 = vsel %vm931, %v922, %v906
        %v945 = vsel %vm931, %v924, %v908
        %v946 = vsel %vm931, %v926, %v910
        %v947 = vsel %vm931, %v928, %v912
        %v949 = vperm.slane %v894, 0
        %v950 = vperm.slane %v894, 1
        %v953 = vmul.f32 %v940, %v949
        %v954 = vmul.f32 %v932, %v950
        %v955 = vmul.f32 %v941, %v949
        %v956 = vmul.f32 %v933, %v950
        %v957 = vmul.f32 %v942, %v949
        %v958 = vmul.f32 %v934, %v950
        %v959 = vmul.f32 %v943, %v949
        %v960 = vmul.f32 %v935, %v950
        %v961 = vmul.f32 %v944, %v949
        %v962 = vmul.f32 %v936, %v950
        %v963 = vmul.f32 %v945, %v949
        %v964 = vmul.f32 %v937, %v950
        %v965 = vmul.f32 %v946, %v949
        %v966 = vmul.f32 %v938, %v950
        %v967 = vmul.f32 %v947, %v949
        %v968 = vmul.f32 %v939, %v950
        %v969 = vadd.f32 %v953, %v786
        %v970 = vadd.f32 %v954, %v855
        %v971 = vadd.f32 %v955, %v788
        %v972 = vadd.f32 %v956, %v857
        %v973 = vadd.f32 %v957, %v791
        %v974 = vadd.f32 %v958, %v860
        %v975 = vadd.f32 %v959, %v793
        %v976 = vadd.f32 %v960, %v862
        %v977 = vadd.f32 %v961, %v796
        %v978 = vadd.f32 %v962, %v865
        %v979 = vadd.f32 %v963, %v798
        %v980 = vadd.f32 %v964, %v867
        %v981 = vadd.f32 %v965, %v801
        %v982 = vadd.f32 %v966, %v870
        %v983 = vadd.f32 %v967, %v803
        %v984 = vadd.f32 %v968, %v872
        %985 = vrot.lane.b32.xlu0 %v806, 127
        %v986 = vpop.permute.xlu0 %985
        %987 = vrot.lane.b32.xlu0 %v808, 127
        %v988 = vpop.permute.xlu0 %987
        %989 = vrot.lane.b32.xlu0 %v811, 127
        %v990 = vpop.permute.xlu0 %989
        %991 = vrot.lane.b32.xlu0 %v813, 127
        %v992 = vpop.permute.xlu0 %991
        %993 = vrot.lane.b32.xlu0 %v816, 127
        %v994 = vpop.permute.xlu0 %993
        %995 = vrot.lane.b32.xlu0 %v818, 127
        %v996 = vpop.permute.xlu0 %995
        %997 = vrot.lane.b32.xlu0 %v821, 127
        %v998 = vpop.permute.xlu0 %997
        %999 = vrot.lane.b32.xlu0 %v823, 127
        %v1000 = vpop.permute.xlu0 %999
        %1001 = vrot.lane.b32.xlu0 %v875, 127
        %v1002 = vpop.permute.xlu0 %1001
        %1003 = vrot.lane.b32.xlu0 %v877, 127
        %v1004 = vpop.permute.xlu0 %1003
        %1005 = vrot.lane.b32.xlu0 %v880, 127
        %v1006 = vpop.permute.xlu0 %1005
        %1007 = vrot.lane.b32.xlu0 %v882, 127
        %v1008 = vpop.permute.xlu0 %1007
        %1009 = vrot.lane.b32.xlu0 %v885, 127
        %v1010 = vpop.permute.xlu0 %1009
        %1011 = vrot.lane.b32.xlu0 %v887, 127
        %v1012 = vpop.permute.xlu0 %1011
        %1013 = vrot.lane.b32.xlu0 %v890, 127
        %v1014 = vpop.permute.xlu0 %1013
        %1015 = vrot.lane.b32.xlu0 %v892, 127
        %v1016 = vpop.permute.xlu0 %1015
        %vm1017 = vcmp.lt.s32.totalorder %v930, 127
        %v1018 = vsel %vm1017, %v986, %v1002
        %v1019 = vsel %vm1017, %v988, %v1004
        %v1020 = vsel %vm1017, %v990, %v1006
        %v1021 = vsel %vm1017, %v992, %v1008
        %v1022 = vsel %vm1017, %v994, %v1010
        %v1023 = vsel %vm1017, %v996, %v1012
        %v1024 = vsel %vm1017, %v998, %v1014
        %v1025 = vsel %vm1017, %v1000, %v1016
        %v1026 = vsel %vm1017, %v1002, %v986
        %v1027 = vsel %vm1017, %v1004, %v988
        %v1028 = vsel %vm1017, %v1006, %v990
        %v1029 = vsel %vm1017, %v1008, %v992
        %v1030 = vsel %vm1017, %v1010, %v994
        %v1031 = vsel %vm1017, %v1012, %v996
        %v1032 = vsel %vm1017, %v1014, %v998
        %v1033 = vsel %vm1017, %v1016, %v1000
        %v1035 = vperm.slane %v896, 0
        %v1036 = vperm.slane %v896, 1
        %v1039 = vmul.f32 %v1018, %v1035
        %v1040 = vmul.f32 %v1026, %v1036
        %v1041 = vmul.f32 %v1019, %v1035
        %v1042 = vmul.f32 %v1027, %v1036
        %v1043 = vmul.f32 %v1020, %v1035
        %v1044 = vmul.f32 %v1028, %v1036
        %v1045 = vmul.f32 %v1021, %v1035
        %v1046 = vmul.f32 %v1029, %v1036
        %v1047 = vmul.f32 %v1022, %v1035
        %v1048 = vmul.f32 %v1030, %v1036
        %v1049 = vmul.f32 %v1023, %v1035
        %v1050 = vmul.f32 %v1031, %v1036
        %v1051 = vmul.f32 %v1024, %v1035
        %v1052 = vmul.f32 %v1032, %v1036
        %v1053 = vmul.f32 %v1025, %v1035
        %v1054 = vmul.f32 %v1033, %v1036
        %v1055 = vadd.f32 %v969, %v1039
        %v1056 = vadd.f32 %v970, %v1040
        %v1057 = vadd.f32 %v971, %v1041
        %v1058 = vadd.f32 %v972, %v1042
        %v1059 = vadd.f32 %v973, %v1043
        %v1060 = vadd.f32 %v974, %v1044
        %v1061 = vadd.f32 %v975, %v1045
        %v1062 = vadd.f32 %v976, %v1046
        %v1063 = vadd.f32 %v977, %v1047
        %v1064 = vadd.f32 %v978, %v1048
        %v1065 = vadd.f32 %v979, %v1049
        %v1066 = vadd.f32 %v980, %v1050
        %v1067 = vadd.f32 %v981, %v1051
        %v1068 = vadd.f32 %v982, %v1052
        %v1069 = vadd.f32 %v983, %v1053
        %v1070 = vadd.f32 %v984, %v1054
        %v1071 = vld [vmem:[%s6] sm:$0xff]
        %v1072 = vld [vmem:[%s6 + $0x8] sm:$0xff]
        %v1073 = vld [vmem:[%s6 + $0x10] sm:$0xff]
        %v1074 = vld [vmem:[%s6 + $0x18] sm:$0xff]
        %v1075 = vld [vmem:[%s6 + $0x20] sm:$0xff]
        %v1076 = vld [vmem:[%s6 + $0x28] sm:$0xff]
        %v1077 = vld [vmem:[%s6 + $0x30] sm:$0xff]
        %v1078 = vld [vmem:[%s6 + $0x38] sm:$0xff]
        %1080 = vset.pattern.permute.xlu0 0
        %1081 = vperm.xlu0 %1080, %v1071
        %v1082 = vpop.permute.xlu0 %1081
        %1085 = vset.pattern.permute.xlu0 0
        %1086 = vperm.xlu0 %1085, %v1072
        %v1087 = vpop.permute.xlu0 %1086
        %1090 = vset.pattern.permute.xlu0 0
        %1091 = vperm.xlu0 %1090, %v1073
        %v1092 = vpop.permute.xlu0 %1091
        %1095 = vset.pattern.permute.xlu0 0
        %1096 = vperm.xlu0 %1095, %v1074
        %v1097 = vpop.permute.xlu0 %1096
        %1100 = vset.pattern.permute.xlu0 0
        %1101 = vperm.xlu0 %1100, %v1075
        %v1102 = vpop.permute.xlu0 %1101
        %1105 = vset.pattern.permute.xlu0 0
        %1106 = vperm.xlu0 %1105, %v1076
        %v1107 = vpop.permute.xlu0 %1106
        %1110 = vset.pattern.permute.xlu0 0
        %1111 = vperm.xlu0 %1110, %v1077
        %v1112 = vpop.permute.xlu0 %1111
        %1115 = vset.pattern.permute.xlu0 0
        %1116 = vperm.xlu0 %1115, %v1078
        %v1117 = vpop.permute.xlu0 %1116
        %v1119 = vadd.f32 %v1055, %v1082
        %v1120 = vadd.f32 %v1056, %v1082
        %v1121 = vadd.f32 %v1057, %v1087
        %v1122 = vadd.f32 %v1058, %v1087
        %v1123 = vadd.f32 %v1059, %v1092
        %v1124 = vadd.f32 %v1060, %v1092
        %v1125 = vadd.f32 %v1061, %v1097
        %v1126 = vadd.f32 %v1062, %v1097
        %v1127 = vadd.f32 %v1063, %v1102
        %v1128 = vadd.f32 %v1064, %v1102
        %v1129 = vadd.f32 %v1065, %v1107
        %v1130 = vadd.f32 %v1066, %v1107
        %v1131 = vadd.f32 %v1067, %v1112
        %v1132 = vadd.f32 %v1068, %v1112
        %v1133 = vadd.f32 %v1069, %v1117
        %v1134 = vadd.f32 %v1070, %v1117
        %v1135 = vmax.f32 %v1119, 0.0
        %v1136 = vmax.f32 %v1120, 0.0
        %v1137 = vmax.f32 %v1121, 0.0
        %v1138 = vmax.f32 %v1122, 0.0
        %v1139 = vmax.f32 %v1123, 0.0
        %v1140 = vmax.f32 %v1124, 0.0
        %v1141 = vmax.f32 %v1125, 0.0
        %v1142 = vmax.f32 %v1126, 0.0
        %v1143 = vmax.f32 %v1127, 0.0
        %v1144 = vmax.f32 %v1128, 0.0
        %v1145 = vmax.f32 %v1129, 0.0
        %v1146 = vmax.f32 %v1130, 0.0
        %v1147 = vmax.f32 %v1131, 0.0
        %v1148 = vmax.f32 %v1132, 0.0
        %v1149 = vmax.f32 %v1133, 0.0
        %v1150 = vmax.f32 %v1134, 0.0
        %v1151 = vld [vmem:[%s7] sm:$0xf]
        %v1152 = vld [vmem:[%s7 + $0x4] sm:$0xf]
        %v1153 = vld [vmem:[%s7 + $0x8] sm:$0xf]
        %v1154 = vld [vmem:[%s7 + $0xc] sm:$0xf]
        %v1155 = vld [vmem:[%s7 + $0x10] sm:$0xf]
        %v1156 = vld [vmem:[%s7 + $0x14] sm:$0xf]
        %v1157 = vld [vmem:[%s7 + $0x18] sm:$0xf]
        %v1158 = vld [vmem:[%s7 + $0x1c] sm:$0xf]
        %v1159 = vpack.c.bf16 %v1137, %v1135
        %v1160 = vpack.c.bf16 %v1138, %v1136
        %v1161 = vpack.c.bf16 %v1141, %v1139
        %v1162 = vpack.c.bf16 %v1142, %v1140
        %v1163 = vpack.c.bf16 %v1145, %v1143
        %v1164 = vpack.c.bf16 %v1146, %v1144
        %v1165 = vpack.c.bf16 %v1149, %v1147
        %v1166 = vpack.c.bf16 %v1150, %v1148
        %v1167 = vld [vmem:[%s8] sm:$0xff]
        %v1168 = vld [vmem:[%s8 + $0x8] sm:$0xff]
        %v1169 = vld [vmem:[%s8 + $0x10] sm:$0xff]
        %v1170 = vld [vmem:[%s8 + $0x18] sm:$0xff]
        %v1171 = vld [vmem:[%s8 + $0x20] sm:$0xff]
        %v1172 = vld [vmem:[%s8 + $0x28] sm:$0xff]
        %v1173 = vld [vmem:[%s8 + $0x30] sm:$0xff]
        %v1174 = vld [vmem:[%s8 + $0x38] sm:$0xff]
        %1176 = vset.pattern.permute.xlu0 0
        %1177 = vperm.xlu0 %1176, %v1167
        %v1178 = vpop.permute.xlu0 %1177
        %1181 = vset.pattern.permute.xlu0 0
        %1182 = vperm.xlu0 %1181, %v1168
        %v1183 = vpop.permute.xlu0 %1182
        %1186 = vset.pattern.permute.xlu0 0
        %1187 = vperm.xlu0 %1186, %v1169
        %v1188 = vpop.permute.xlu0 %1187
        %1191 = vset.pattern.permute.xlu0 0
        %1192 = vperm.xlu0 %1191, %v1170
        %v1193 = vpop.permute.xlu0 %1192
        %1196 = vset.pattern.permute.xlu0 0
        %1197 = vperm.xlu0 %1196, %v1171
        %v1198 = vpop.permute.xlu0 %1197
        %1201 = vset.pattern.permute.xlu0 0
        %1202 = vperm.xlu0 %1201, %v1172
        %v1203 = vpop.permute.xlu0 %1202
        %1206 = vset.pattern.permute.xlu0 0
        %1207 = vperm.xlu0 %1206, %v1173
        %v1208 = vpop.permute.xlu0 %1207
        %1211 = vset.pattern.permute.xlu0 0
        %1212 = vperm.xlu0 %1211, %v1174
        %v1213 = vpop.permute.xlu0 %1212
        %v1223 = vunpack.c.l.b16 %v1151
        %v1224 = vunpack.c.l.b16 %v1152
        %v1225 = vunpack.c.l.b16 %v1153
        %v1226 = vunpack.c.l.b16 %v1154
        %v1227 = vunpack.c.l.b16 %v1155
        %v1228 = vunpack.c.l.b16 %v1156
        %v1229 = vunpack.c.l.b16 %v1157
        %v1230 = vunpack.c.l.b16 %v1158
        %v1231 = vpack.c.b16 %v1224, %v1223
        %v1232 = vpack.c.b16 %v1226, %v1225
        %v1233 = vpack.c.b16 %v1228, %v1227
        %v1234 = vpack.c.b16 %v1230, %v1229
        %v1236 = vsel %vm719, %v1231, 0
        %v1239 = vsel %vm719, %v1232, 0
        %v1242 = vsel %vm719, %v1233, 0
        %v1245 = vsel %vm719, %v1234, 0
        %1247 = vmatpush.bf16.msra.mxu0 0
        %1248 = vmatpush.bf16.msra.mxu0 0
        %1249 = vmatpush.bf16.msra.mxu0 0
        %1250 = vmatpush.bf16.msra.mxu0 0
        %1251 = vmatpush.bf16.msra.mxu0 %v1165
        %1252 = vmatpush.bf16.msra.mxu0 %v1163
        %1253 = vmatpush.bf16.msra.mxu0 %v1161
        %1254 = vmatpush.bf16.msra.mxu0 %v1159
        %1255 = vmatmul.bf16.gmra.mxu0 %v1236
        %v1256 = vpop.f32.mrf.mxu0
        %v1257 = vadd.f32 %v1178, %v1256
        %v1258 = vpop.f32.mrf.mxu0
        %v1259 = vadd.f32 %v1183, %v1258
        %1260 = vmatmul.bf16.gmra.mxu0 %v1239
        %v1261 = vpop.f32.mrf.mxu0
        %v1262 = vadd.f32 %v1188, %v1261
        %v1263 = vpop.f32.mrf.mxu0
        %v1264 = vadd.f32 %v1193, %v1263
        %1265 = vmatmul.bf16.gmra.mxu0 %v1242
        %v1266 = vpop.f32.mrf.mxu0
        %v1267 = vadd.f32 %v1198, %v1266
        %v1268 = vpop.f32.mrf.mxu0
        %v1269 = vadd.f32 %v1203, %v1268
        %1270 = vmatmul.bf16.gmra.mxu0 %v1245
        %v1271 = vpop.f32.mrf.mxu0
        %v1272 = vadd.f32 %v1208, %v1271
        %v1273 = vpop.f32.mrf.mxu0
        %v1274 = vadd.f32 %v1213, %v1273
        %1275 = vdwg.mxu0
        %1276 = vmatpush.bf16.msra.mxu0 0
        %1277 = vmatpush.bf16.msra.mxu0 0
        %1278 = vmatpush.bf16.msra.mxu0 0
        %1279 = vmatpush.bf16.msra.mxu0 0
        %1280 = vmatpush.bf16.msra.mxu0 %v1166
        %1281 = vmatpush.bf16.msra.mxu0 %v1164
        %1282 = vmatpush.bf16.msra.mxu0 %v1162
        %1283 = vmatpush.bf16.msra.mxu0 %v1160
        %1284 = vmatmul.bf16.gmra.mxu0 %v1236
        %v1285 = vpop.f32.mrf.mxu0
        %v1286 = vadd.f32 %v1178, %v1285
        %v1287 = vpop.f32.mrf.mxu0
        %v1288 = vadd.f32 %v1183, %v1287
        %1289 = vmatmul.bf16.gmra.mxu0 %v1239
        %v1290 = vpop.f32.mrf.mxu0
        %v1291 = vadd.f32 %v1188, %v1290
        %v1292 = vpop.f32.mrf.mxu0
        %v1293 = vadd.f32 %v1193, %v1292
        %1294 = vmatmul.bf16.gmra.mxu0 %v1242
        %v1295 = vpop.f32.mrf.mxu0
        %v1296 = vadd.f32 %v1198, %v1295
        %v1297 = vpop.f32.mrf.mxu0
        %v1298 = vadd.f32 %v1203, %v1297
        %1299 = vmatmul.bf16.gmra.mxu0 %v1245
        %v1300 = vpop.f32.mrf.mxu0
        %v1301 = vadd.f32 %v1208, %v1300
        %v1302 = vpop.f32.mrf.mxu0
        %v1303 = vadd.f32 %v1213, %v1302
        %1304 = vdwg.mxu0
        %v1305 = vadd.f32 %v579, %v1257
        %v1306 = vadd.f32 %v608, %v1286
        %v1307 = vadd.f32 %v581, %v1259
        %v1308 = vadd.f32 %v610, %v1288
        %v1309 = vadd.f32 %v584, %v1262
        %v1310 = vadd.f32 %v613, %v1291
        %v1311 = vadd.f32 %v586, %v1264
        %v1312 = vadd.f32 %v615, %v1293
        %v1313 = vadd.f32 %v589, %v1267
        %v1314 = vadd.f32 %v618, %v1296
        %v1315 = vadd.f32 %v591, %v1269
        %v1316 = vadd.f32 %v620, %v1298
        %v1317 = vadd.f32 %v594, %v1272
        %v1318 = vadd.f32 %v623, %v1301
        %v1319 = vadd.f32 %v596, %v1274
        %v1320 = vadd.f32 %v625, %v1303
        %v1322 = vperm.slane %v459, 0
        %v1323 = vperm.slane %v459, 1
        %v1326 = vmul.f32 %v1305, %v1322
        %v1327 = vmul.f32 %v1306, %v1323
        %v1328 = vmul.f32 %v1307, %v1322
        %v1329 = vmul.f32 %v1308, %v1323
        %v1330 = vmul.f32 %v1309, %v1322
        %v1331 = vmul.f32 %v1310, %v1323
        %v1332 = vmul.f32 %v1311, %v1322
        %v1333 = vmul.f32 %v1312, %v1323
        %v1334 = vmul.f32 %v1313, %v1322
        %v1335 = vmul.f32 %v1314, %v1323
        %v1336 = vmul.f32 %v1315, %v1322
        %v1337 = vmul.f32 %v1316, %v1323
        %v1338 = vmul.f32 %v1317, %v1322
        %v1339 = vmul.f32 %v1318, %v1323
        %v1340 = vmul.f32 %v1319, %v1322
        %v1341 = vmul.f32 %v1320, %v1323
        %s1342 = scalar_lea.vmem %s5, 96
        %v1343 = vld [vmem:[%s1342] sm:$0xf]
        %v1344 = vld [vmem:[%s1342 + $0x4] sm:$0xf]
        %v1345 = vld [vmem:[%s1342 + $0x8] sm:$0xf]
        %v1346 = vld [vmem:[%s1342 + $0xc] sm:$0xf]
        %v1347 = vld [vmem:[%s1342 + $0x10] sm:$0xf]
        %v1348 = vld [vmem:[%s1342 + $0x14] sm:$0xf]
        %v1349 = vld [vmem:[%s1342 + $0x18] sm:$0xf]
        %v1350 = vld [vmem:[%s1342 + $0x1c] sm:$0xf]
        %v1351 = vld [vmem:[%s1342 + $0x20] sm:$0xf]
        %v1352 = vld [vmem:[%s1342 + $0x24] sm:$0xf]
        %v1353 = vld [vmem:[%s1342 + $0x28] sm:$0xf]
        %v1354 = vld [vmem:[%s1342 + $0x2c] sm:$0xf]
        %v1355 = vld [vmem:[%s1342 + $0x30] sm:$0xf]
        %v1356 = vld [vmem:[%s1342 + $0x34] sm:$0xf]
        %v1357 = vld [vmem:[%s1342 + $0x38] sm:$0xf]
        %v1358 = vld [vmem:[%s1342 + $0x3c] sm:$0xf]
        %v1359 = vld [vmem:[%s1342 + $0x40] sm:$0xf]
        %v1360 = vld [vmem:[%s1342 + $0x44] sm:$0xf]
        %v1361 = vld [vmem:[%s1342 + $0x48] sm:$0xf]
        %v1362 = vld [vmem:[%s1342 + $0x4c] sm:$0xf]
        %v1363 = vld [vmem:[%s1342 + $0x50] sm:$0xf]
        %v1364 = vld [vmem:[%s1342 + $0x54] sm:$0xf]
        %v1365 = vld [vmem:[%s1342 + $0x58] sm:$0xf]
        %v1366 = vld [vmem:[%s1342 + $0x5c] sm:$0xf]
        %v1367 = vpack.c.bf16 %v1328, %v1326
        %v1368 = vpack.c.bf16 %v1329, %v1327
        %v1369 = vpack.c.bf16 %v1332, %v1330
        %v1370 = vpack.c.bf16 %v1333, %v1331
        %v1371 = vpack.c.bf16 %v1336, %v1334
        %v1372 = vpack.c.bf16 %v1337, %v1335
        %v1373 = vpack.c.bf16 %v1340, %v1338
        %v1374 = vpack.c.bf16 %v1341, %v1339
        %v1399 = vunpack.c.l.b16 %v1343
        %v1400 = vunpack.c.l.b16 %v1344
        %v1401 = vunpack.c.l.b16 %v1345
        %v1402 = vunpack.c.l.b16 %v1346
        %v1403 = vunpack.c.l.b16 %v1347
        %v1404 = vunpack.c.l.b16 %v1348
        %v1405 = vunpack.c.l.b16 %v1349
        %v1406 = vunpack.c.l.b16 %v1350
        %v1407 = vunpack.c.l.b16 %v1351
        %v1408 = vunpack.c.l.b16 %v1352
        %v1409 = vunpack.c.l.b16 %v1353
        %v1410 = vunpack.c.l.b16 %v1354
        %v1411 = vunpack.c.l.b16 %v1355
        %v1412 = vunpack.c.l.b16 %v1356
        %v1413 = vunpack.c.l.b16 %v1357
        %v1414 = vunpack.c.l.b16 %v1358
        %v1415 = vunpack.c.l.b16 %v1359
        %v1416 = vunpack.c.l.b16 %v1360
        %v1417 = vunpack.c.l.b16 %v1361
        %v1418 = vunpack.c.l.b16 %v1362
        %v1419 = vunpack.c.l.b16 %v1363
        %v1420 = vunpack.c.l.b16 %v1364
        %v1421 = vunpack.c.l.b16 %v1365
        %v1422 = vunpack.c.l.b16 %v1366
        %v1423 = vpack.c.b16 %v1400, %v1399
        %v1424 = vpack.c.b16 %v1402, %v1401
        %v1425 = vpack.c.b16 %v1404, %v1403
        %v1426 = vpack.c.b16 %v1406, %v1405
        %v1427 = vpack.c.b16 %v1408, %v1407
        %v1428 = vpack.c.b16 %v1410, %v1409
        %v1429 = vpack.c.b16 %v1412, %v1411
        %v1430 = vpack.c.b16 %v1414, %v1413
        %v1431 = vpack.c.b16 %v1416, %v1415
        %v1432 = vpack.c.b16 %v1418, %v1417
        %v1433 = vpack.c.b16 %v1420, %v1419
        %v1434 = vpack.c.b16 %v1422, %v1421
        %v1436 = vsel %vm719, %v1423, 0
        %v1439 = vsel %vm719, %v1424, 0
        %v1442 = vsel %vm719, %v1425, 0
        %v1445 = vsel %vm719, %v1426, 0
        %v1448 = vsel %vm719, %v1427, 0
        %v1451 = vsel %vm719, %v1428, 0
        %v1454 = vsel %vm719, %v1429, 0
        %v1457 = vsel %vm719, %v1430, 0
        %v1460 = vsel %vm719, %v1431, 0
        %v1463 = vsel %vm719, %v1432, 0
        %v1466 = vsel %vm719, %v1433, 0
        %v1469 = vsel %vm719, %v1434, 0
        %1471 = vmatpush.bf16.msra.mxu0 0
        %1472 = vmatpush.bf16.msra.mxu0 0
        %1473 = vmatpush.bf16.msra.mxu0 0
        %1474 = vmatpush.bf16.msra.mxu0 0
        %1475 = vmatpush.bf16.msra.mxu0 %v1373
        %1476 = vmatpush.bf16.msra.mxu0 %v1371
        %1477 = vmatpush.bf16.msra.mxu0 %v1369
        %1478 = vmatpush.bf16.msra.mxu0 %v1367
        %1479 = vmatmul.bf16.gmra.mxu0 %v1436
        %v1480 = vpop.f32.mrf.mxu0
        %v1481 = vadd.f32 0.0, %v1480
        %v1482 = vpop.f32.mrf.mxu0
        %v1483 = vadd.f32 0.0, %v1482
        %1484 = vmatmul.bf16.gmra.mxu0 %v1439
        %v1485 = vpop.f32.mrf.mxu0
        %v1486 = vadd.f32 0.0, %v1485
        %v1487 = vpop.f32.mrf.mxu0
        %v1488 = vadd.f32 0.0, %v1487
        %1489 = vmatmul.bf16.gmra.mxu0 %v1442
        %v1490 = vpop.f32.mrf.mxu0
        %v1491 = vadd.f32 0.0, %v1490
        %v1492 = vpop.f32.mrf.mxu0
        %v1493 = vadd.f32 0.0, %v1492
        %1494 = vmatmul.bf16.gmra.mxu0 %v1445
        %v1495 = vpop.f32.mrf.mxu0
        %v1496 = vadd.f32 0.0, %v1495
        %v1497 = vpop.f32.mrf.mxu0
        %v1498 = vadd.f32 0.0, %v1497
        %1499 = vmatmul.bf16.gmra.mxu0 %v1448
        %v1500 = vpop.f32.mrf.mxu0
        %v1501 = vadd.f32 0.0, %v1500
        %v1502 = vpop.f32.mrf.mxu0
        %v1503 = vadd.f32 0.0, %v1502
        %1504 = vmatmul.bf16.gmra.mxu0 %v1451
        %v1505 = vpop.f32.mrf.mxu0
        %v1506 = vadd.f32 0.0, %v1505
        %v1507 = vpop.f32.mrf.mxu0
        %v1508 = vadd.f32 0.0, %v1507
        %1509 = vmatmul.bf16.gmra.mxu0 %v1454
        %v1510 = vpop.f32.mrf.mxu0
        %v1511 = vadd.f32 0.0, %v1510
        %v1512 = vpop.f32.mrf.mxu0
        %v1513 = vadd.f32 0.0, %v1512
        %1514 = vmatmul.bf16.gmra.mxu0 %v1457
        %v1515 = vpop.f32.mrf.mxu0
        %v1516 = vadd.f32 0.0, %v1515
        %v1517 = vpop.f32.mrf.mxu0
        %v1518 = vadd.f32 0.0, %v1517
        %1519 = vmatmul.bf16.gmra.mxu0 %v1460
        %v1520 = vpop.f32.mrf.mxu0
        %v1521 = vadd.f32 0.0, %v1520
        %v1522 = vpop.f32.mrf.mxu0
        %v1523 = vadd.f32 0.0, %v1522
        %1524 = vmatmul.bf16.gmra.mxu0 %v1463
        %v1525 = vpop.f32.mrf.mxu0
        %v1526 = vadd.f32 0.0, %v1525
        %v1527 = vpop.f32.mrf.mxu0
        %v1528 = vadd.f32 0.0, %v1527
        %1529 = vmatmul.bf16.gmra.mxu0 %v1466
        %v1530 = vpop.f32.mrf.mxu0
        %v1531 = vadd.f32 0.0, %v1530
        %v1532 = vpop.f32.mrf.mxu0
        %v1533 = vadd.f32 0.0, %v1532
        %1534 = vmatmul.bf16.gmra.mxu0 %v1469
        %v1535 = vpop.f32.mrf.mxu0
        %v1536 = vadd.f32 0.0, %v1535
        %v1537 = vpop.f32.mrf.mxu0
        %v1538 = vadd.f32 0.0, %v1537
        %1539 = vdwg.mxu0
        %1540 = vmatpush.bf16.msra.mxu0 0
        %1541 = vmatpush.bf16.msra.mxu0 0
        %1542 = vmatpush.bf16.msra.mxu0 0
        %1543 = vmatpush.bf16.msra.mxu0 0
        %1544 = vmatpush.bf16.msra.mxu0 %v1374
        %1545 = vmatpush.bf16.msra.mxu0 %v1372
        %1546 = vmatpush.bf16.msra.mxu0 %v1370
        %1547 = vmatpush.bf16.msra.mxu0 %v1368
        %1548 = vmatmul.bf16.gmra.mxu0 %v1436
        %v1549 = vpop.f32.mrf.mxu0
        %v1550 = vadd.f32 0.0, %v1549
        %v1551 = vpop.f32.mrf.mxu0
        %v1552 = vadd.f32 0.0, %v1551
        %1553 = vmatmul.bf16.gmra.mxu0 %v1439
        %v1554 = vpop.f32.mrf.mxu0
        %v1555 = vadd.f32 0.0, %v1554
        %v1556 = vpop.f32.mrf.mxu0
        %v1557 = vadd.f32 0.0, %v1556
        %1558 = vmatmul.bf16.gmra.mxu0 %v1442
        %v1559 = vpop.f32.mrf.mxu0
        %v1560 = vadd.f32 0.0, %v1559
        %v1561 = vpop.f32.mrf.mxu0
        %v1562 = vadd.f32 0.0, %v1561
        %1563 = vmatmul.bf16.gmra.mxu0 %v1445
        %v1564 = vpop.f32.mrf.mxu0
        %v1565 = vadd.f32 0.0, %v1564
        %v1566 = vpop.f32.mrf.mxu0
        %v1567 = vadd.f32 0.0, %v1566
        %1568 = vmatmul.bf16.gmra.mxu0 %v1448
        %v1569 = vpop.f32.mrf.mxu0
        %v1570 = vadd.f32 0.0, %v1569
        %v1571 = vpop.f32.mrf.mxu0
        %v1572 = vadd.f32 0.0, %v1571
        %1573 = vmatmul.bf16.gmra.mxu0 %v1451
        %v1574 = vpop.f32.mrf.mxu0
        %v1575 = vadd.f32 0.0, %v1574
        %v1576 = vpop.f32.mrf.mxu0
        %v1577 = vadd.f32 0.0, %v1576
        %1578 = vmatmul.bf16.gmra.mxu0 %v1454
        %v1579 = vpop.f32.mrf.mxu0
        %v1580 = vadd.f32 0.0, %v1579
        %v1581 = vpop.f32.mrf.mxu0
        %v1582 = vadd.f32 0.0, %v1581
        %1583 = vmatmul.bf16.gmra.mxu0 %v1457
        %v1584 = vpop.f32.mrf.mxu0
        %v1585 = vadd.f32 0.0, %v1584
        %v1586 = vpop.f32.mrf.mxu0
        %v1587 = vadd.f32 0.0, %v1586
        %1588 = vmatmul.bf16.gmra.mxu0 %v1460
        %v1589 = vpop.f32.mrf.mxu0
        %v1590 = vadd.f32 0.0, %v1589
        %v1591 = vpop.f32.mrf.mxu0
        %v1592 = vadd.f32 0.0, %v1591
        %1593 = vmatmul.bf16.gmra.mxu0 %v1463
        %v1594 = vpop.f32.mrf.mxu0
        %v1595 = vadd.f32 0.0, %v1594
        %v1596 = vpop.f32.mrf.mxu0
        %v1597 = vadd.f32 0.0, %v1596
        %1598 = vmatmul.bf16.gmra.mxu0 %v1466
        %v1599 = vpop.f32.mrf.mxu0
        %v1600 = vadd.f32 0.0, %v1599
        %v1601 = vpop.f32.mrf.mxu0
        %v1602 = vadd.f32 0.0, %v1601
        %1603 = vmatmul.bf16.gmra.mxu0 %v1469
        %v1604 = vpop.f32.mrf.mxu0
        %v1605 = vadd.f32 0.0, %v1604
        %v1606 = vpop.f32.mrf.mxu0
        %v1607 = vadd.f32 0.0, %v1606
        %1608 = vdwg.mxu0
        %s1609 = scalar_lea.vmem %s2, 2
        %v1610 = vld [vmem:[%s1609] ss:$8 sm:$0x3]
        %s1611 = scalar_lea.vmem %s2, 3
        %v1612 = vld [vmem:[%s1611] ss:$8 sm:$0x3]
        %1613 = vrot.lane.b32.xlu0 %v1481, 2
        %v1614 = vpop.permute.xlu0 %1613
        %1615 = vrot.lane.b32.xlu0 %v1483, 2
        %v1616 = vpop.permute.xlu0 %1615
        %1617 = vrot.lane.b32.xlu0 %v1486, 2
        %v1618 = vpop.permute.xlu0 %1617
        %1619 = vrot.lane.b32.xlu0 %v1488, 2
        %v1620 = vpop.permute.xlu0 %1619
        %1621 = vrot.lane.b32.xlu0 %v1491, 2
        %v1622 = vpop.permute.xlu0 %1621
        %1623 = vrot.lane.b32.xlu0 %v1493, 2
        %v1624 = vpop.permute.xlu0 %1623
        %1625 = vrot.lane.b32.xlu0 %v1496, 2
        %v1626 = vpop.permute.xlu0 %1625
        %1627 = vrot.lane.b32.xlu0 %v1498, 2
        %v1628 = vpop.permute.xlu0 %1627
        %1629 = vrot.lane.b32.xlu0 %v1550, 2
        %v1630 = vpop.permute.xlu0 %1629
        %1631 = vrot.lane.b32.xlu0 %v1552, 2
        %v1632 = vpop.permute.xlu0 %1631
        %1633 = vrot.lane.b32.xlu0 %v1555, 2
        %v1634 = vpop.permute.xlu0 %1633
        %1635 = vrot.lane.b32.xlu0 %v1557, 2
        %v1636 = vpop.permute.xlu0 %1635
        %1637 = vrot.lane.b32.xlu0 %v1560, 2
        %v1638 = vpop.permute.xlu0 %1637
        %1639 = vrot.lane.b32.xlu0 %v1562, 2
        %v1640 = vpop.permute.xlu0 %1639
        %1641 = vrot.lane.b32.xlu0 %v1565, 2
        %v1642 = vpop.permute.xlu0 %1641
        %1643 = vrot.lane.b32.xlu0 %v1567, 2
        %v1644 = vpop.permute.xlu0 %1643
        %vm1645 = vcmp.lt.s32.totalorder %v930, 2
        %v1646 = vsel %vm1645, %v1614, %v1630
        %v1647 = vsel %vm1645, %v1616, %v1632
        %v1648 = vsel %vm1645, %v1618, %v1634
        %v1649 = vsel %vm1645, %v1620, %v1636
        %v1650 = vsel %vm1645, %v1622, %v1638
        %v1651 = vsel %vm1645, %v1624, %v1640
        %v1652 = vsel %vm1645, %v1626, %v1642
        %v1653 = vsel %vm1645, %v1628, %v1644
        %v1654 = vsel %vm1645, %v1630, %v1614
        %v1655 = vsel %vm1645, %v1632, %v1616
        %v1656 = vsel %vm1645, %v1634, %v1618
        %v1657 = vsel %vm1645, %v1636, %v1620
        %v1658 = vsel %vm1645, %v1638, %v1622
        %v1659 = vsel %vm1645, %v1640, %v1624
        %v1660 = vsel %vm1645, %v1642, %v1626
        %v1661 = vsel %vm1645, %v1644, %v1628
        %v1663 = vperm.slane %v1610, 0
        %v1664 = vperm.slane %v1610, 1
        %v1667 = vmul.f32 %v1654, %v1663
        %v1668 = vmul.f32 %v1646, %v1664
        %v1669 = vmul.f32 %v1655, %v1663
        %v1670 = vmul.f32 %v1647, %v1664
        %v1671 = vmul.f32 %v1656, %v1663
        %v1672 = vmul.f32 %v1648, %v1664
        %v1673 = vmul.f32 %v1657, %v1663
        %v1674 = vmul.f32 %v1649, %v1664
        %v1675 = vmul.f32 %v1658, %v1663
        %v1676 = vmul.f32 %v1650, %v1664
        %v1677 = vmul.f32 %v1659, %v1663
        %v1678 = vmul.f32 %v1651, %v1664
        %v1679 = vmul.f32 %v1660, %v1663
        %v1680 = vmul.f32 %v1652, %v1664
        %v1681 = vmul.f32 %v1661, %v1663
        %v1682 = vmul.f32 %v1653, %v1664
        %v1683 = vadd.f32 %v1667, %v1501
        %v1684 = vadd.f32 %v1668, %v1570
        %v1685 = vadd.f32 %v1669, %v1503
        %v1686 = vadd.f32 %v1670, %v1572
        %v1687 = vadd.f32 %v1671, %v1506
        %v1688 = vadd.f32 %v1672, %v1575
        %v1689 = vadd.f32 %v1673, %v1508
        %v1690 = vadd.f32 %v1674, %v1577
        %v1691 = vadd.f32 %v1675, %v1511
        %v1692 = vadd.f32 %v1676, %v1580
        %v1693 = vadd.f32 %v1677, %v1513
        %v1694 = vadd.f32 %v1678, %v1582
        %v1695 = vadd.f32 %v1679, %v1516
        %v1696 = vadd.f32 %v1680, %v1585
        %v1697 = vadd.f32 %v1681, %v1518
        %v1698 = vadd.f32 %v1682, %v1587
        %1699 = vrot.lane.b32.xlu0 %v1521, 126
        %v1700 = vpop.permute.xlu0 %1699
        %1701 = vrot.lane.b32.xlu0 %v1523, 126
        %v1702 = vpop.permute.xlu0 %1701
        %1703 = vrot.lane.b32.xlu0 %v1526, 126
        %v1704 = vpop.permute.xlu0 %1703
        %1705 = vrot.lane.b32.xlu0 %v1528, 126
        %v1706 = vpop.permute.xlu0 %1705
        %1707 = vrot.lane.b32.xlu0 %v1531, 126
        %v1708 = vpop.permute.xlu0 %1707
        %1709 = vrot.lane.b32.xlu0 %v1533, 126
        %v1710 = vpop.permute.xlu0 %1709
        %1711 = vrot.lane.b32.xlu0 %v1536, 126
        %v1712 = vpop.permute.xlu0 %1711
        %1713 = vrot.lane.b32.xlu0 %v1538, 126
        %v1714 = vpop.permute.xlu0 %1713
        %1715 = vrot.lane.b32.xlu0 %v1590, 126
        %v1716 = vpop.permute.xlu0 %1715
        %1717 = vrot.lane.b32.xlu0 %v1592, 126
        %v1718 = vpop.permute.xlu0 %1717
        %1719 = vrot.lane.b32.xlu0 %v1595, 126
        %v1720 = vpop.permute.xlu0 %1719
        %1721 = vrot.lane.b32.xlu0 %v1597, 126
        %v1722 = vpop.permute.xlu0 %1721
        %1723 = vrot.lane.b32.xlu0 %v1600, 126
        %v1724 = vpop.permute.xlu0 %1723
        %1725 = vrot.lane.b32.xlu0 %v1602, 126
        %v1726 = vpop.permute.xlu0 %1725
        %1727 = vrot.lane.b32.xlu0 %v1605, 126
        %v1728 = vpop.permute.xlu0 %1727
        %1729 = vrot.lane.b32.xlu0 %v1607, 126
        %v1730 = vpop.permute.xlu0 %1729
        %vm1731 = vcmp.lt.s32.totalorder %v930, 126
        %v1732 = vsel %vm1731, %v1700, %v1716
        %v1733 = vsel %vm1731, %v1702, %v1718
        %v1734 = vsel %vm1731, %v1704, %v1720
        %v1735 = vsel %vm1731, %v1706, %v1722
        %v1736 = vsel %vm1731, %v1708, %v1724
        %v1737 = vsel %vm1731, %v1710, %v1726
        %v1738 = vsel %vm1731, %v1712, %v1728
        %v1739 = vsel %vm1731, %v1714, %v1730
        %v1740 = vsel %vm1731, %v1716, %v1700
        %v1741 = vsel %vm1731, %v1718, %v1702
        %v1742 = vsel %vm1731, %v1720, %v1704
        %v1743 = vsel %vm1731, %v1722, %v1706
        %v1744 = vsel %vm1731, %v1724, %v1708
        %v1745 = vsel %vm1731, %v1726, %v1710
        %v1746 = vsel %vm1731, %v1728, %v1712
        %v1747 = vsel %vm1731, %v1730, %v1714
        %v1749 = vperm.slane %v1612, 0
        %v1750 = vperm.slane %v1612, 1
        %v1753 = vmul.f32 %v1732, %v1749
        %v1754 = vmul.f32 %v1740, %v1750
        %v1755 = vmul.f32 %v1733, %v1749
        %v1756 = vmul.f32 %v1741, %v1750
        %v1757 = vmul.f32 %v1734, %v1749
        %v1758 = vmul.f32 %v1742, %v1750
        %v1759 = vmul.f32 %v1735, %v1749
        %v1760 = vmul.f32 %v1743, %v1750
        %v1761 = vmul.f32 %v1736, %v1749
        %v1762 = vmul.f32 %v1744, %v1750
        %v1763 = vmul.f32 %v1737, %v1749
        %v1764 = vmul.f32 %v1745, %v1750
        %v1765 = vmul.f32 %v1738, %v1749
        %v1766 = vmul.f32 %v1746, %v1750
        %v1767 = vmul.f32 %v1739, %v1749
        %v1768 = vmul.f32 %v1747, %v1750
        %v1769 = vadd.f32 %v1683, %v1753
        %v1770 = vadd.f32 %v1684, %v1754
        %v1771 = vadd.f32 %v1685, %v1755
        %v1772 = vadd.f32 %v1686, %v1756
        %v1773 = vadd.f32 %v1687, %v1757
        %v1774 = vadd.f32 %v1688, %v1758
        %v1775 = vadd.f32 %v1689, %v1759
        %v1776 = vadd.f32 %v1690, %v1760
        %v1777 = vadd.f32 %v1691, %v1761
        %v1778 = vadd.f32 %v1692, %v1762
        %v1779 = vadd.f32 %v1693, %v1763
        %v1780 = vadd.f32 %v1694, %v1764
        %v1781 = vadd.f32 %v1695, %v1765
        %v1782 = vadd.f32 %v1696, %v1766
        %v1783 = vadd.f32 %v1697, %v1767
        %v1784 = vadd.f32 %v1698, %v1768
        %s1785 = scalar_lea.vmem %s6, 64
        %v1786 = vld [vmem:[%s1785] sm:$0xff]
        %v1787 = vld [vmem:[%s1785 + $0x8] sm:$0xff]
        %v1788 = vld [vmem:[%s1785 + $0x10] sm:$0xff]
        %v1789 = vld [vmem:[%s1785 + $0x18] sm:$0xff]
        %v1790 = vld [vmem:[%s1785 + $0x20] sm:$0xff]
        %v1791 = vld [vmem:[%s1785 + $0x28] sm:$0xff]
        %v1792 = vld [vmem:[%s1785 + $0x30] sm:$0xff]
        %v1793 = vld [vmem:[%s1785 + $0x38] sm:$0xff]
        %1795 = vset.pattern.permute.xlu0 0
        %1796 = vperm.xlu0 %1795, %v1786
        %v1797 = vpop.permute.xlu0 %1796
        %1800 = vset.pattern.permute.xlu0 0
        %1801 = vperm.xlu0 %1800, %v1787
        %v1802 = vpop.permute.xlu0 %1801
        %1805 = vset.pattern.permute.xlu0 0
        %1806 = vperm.xlu0 %1805, %v1788
        %v1807 = vpop.permute.xlu0 %1806
        %1810 = vset.pattern.permute.xlu0 0
        %1811 = vperm.xlu0 %1810, %v1789
        %v1812 = vpop.permute.xlu0 %1811
        %1815 = vset.pattern.permute.xlu0 0
        %1816 = vperm.xlu0 %1815, %v1790
        %v1817 = vpop.permute.xlu0 %1816
        %1820 = vset.pattern.permute.xlu0 0
        %1821 = vperm.xlu0 %1820, %v1791
        %v1822 = vpop.permute.xlu0 %1821
        %1825 = vset.pattern.permute.xlu0 0
        %1826 = vperm.xlu0 %1825, %v1792
        %v1827 = vpop.permute.xlu0 %1826
        %1830 = vset.pattern.permute.xlu0 0
        %1831 = vperm.xlu0 %1830, %v1793
        %v1832 = vpop.permute.xlu0 %1831
        %v1834 = vadd.f32 %v1769, %v1797
        %v1835 = vadd.f32 %v1770, %v1797
        %v1836 = vadd.f32 %v1771, %v1802
        %v1837 = vadd.f32 %v1772, %v1802
        %v1838 = vadd.f32 %v1773, %v1807
        %v1839 = vadd.f32 %v1774, %v1807
        %v1840 = vadd.f32 %v1775, %v1812
        %v1841 = vadd.f32 %v1776, %v1812
        %v1842 = vadd.f32 %v1777, %v1817
        %v1843 = vadd.f32 %v1778, %v1817
        %v1844 = vadd.f32 %v1779, %v1822
        %v1845 = vadd.f32 %v1780, %v1822
        %v1846 = vadd.f32 %v1781, %v1827
        %v1847 = vadd.f32 %v1782, %v1827
        %v1848 = vadd.f32 %v1783, %v1832
        %v1849 = vadd.f32 %v1784, %v1832
        %v1850 = vmax.f32 %v1834, 0.0
        %v1851 = vmax.f32 %v1835, 0.0
        %v1852 = vmax.f32 %v1836, 0.0
        %v1853 = vmax.f32 %v1837, 0.0
        %v1854 = vmax.f32 %v1838, 0.0
        %v1855 = vmax.f32 %v1839, 0.0
        %v1856 = vmax.f32 %v1840, 0.0
        %v1857 = vmax.f32 %v1841, 0.0
        %v1858 = vmax.f32 %v1842, 0.0
        %v1859 = vmax.f32 %v1843, 0.0
        %v1860 = vmax.f32 %v1844, 0.0
        %v1861 = vmax.f32 %v1845, 0.0
        %v1862 = vmax.f32 %v1846, 0.0
        %v1863 = vmax.f32 %v1847, 0.0
        %v1864 = vmax.f32 %v1848, 0.0
        %v1865 = vmax.f32 %v1849, 0.0
        %s1866 = scalar_lea.vmem %s7, 32
        %v1867 = vld [vmem:[%s1866] sm:$0xf]
        %v1868 = vld [vmem:[%s1866 + $0x4] sm:$0xf]
        %v1869 = vld [vmem:[%s1866 + $0x8] sm:$0xf]
        %v1870 = vld [vmem:[%s1866 + $0xc] sm:$0xf]
        %v1871 = vld [vmem:[%s1866 + $0x10] sm:$0xf]
        %v1872 = vld [vmem:[%s1866 + $0x14] sm:$0xf]
        %v1873 = vld [vmem:[%s1866 + $0x18] sm:$0xf]
        %v1874 = vld [vmem:[%s1866 + $0x1c] sm:$0xf]
        %v1875 = vpack.c.bf16 %v1852, %v1850
        %v1876 = vpack.c.bf16 %v1853, %v1851
        %v1877 = vpack.c.bf16 %v1856, %v1854
        %v1878 = vpack.c.bf16 %v1857, %v1855
        %v1879 = vpack.c.bf16 %v1860, %v1858
        %v1880 = vpack.c.bf16 %v1861, %v1859
        %v1881 = vpack.c.bf16 %v1864, %v1862
        %v1882 = vpack.c.bf16 %v1865, %v1863
        %s1883 = scalar_lea.vmem %s8, 64
        %v1884 = vld [vmem:[%s1883] sm:$0xff]
        %v1885 = vld [vmem:[%s1883 + $0x8] sm:$0xff]
        %v1886 = vld [vmem:[%s1883 + $0x10] sm:$0xff]
        %v1887 = vld [vmem:[%s1883 + $0x18] sm:$0xff]
        %v1888 = vld [vmem:[%s1883 + $0x20] sm:$0xff]
        %v1889 = vld [vmem:[%s1883 + $0x28] sm:$0xff]
        %v1890 = vld [vmem:[%s1883 + $0x30] sm:$0xff]
        %v1891 = vld [vmem:[%s1883 + $0x38] sm:$0xff]
        %1893 = vset.pattern.permute.xlu0 0
        %1894 = vperm.xlu0 %1893, %v1884
        %v1895 = vpop.permute.xlu0 %1894
        %1898 = vset.pattern.permute.xlu0 0
        %1899 = vperm.xlu0 %1898, %v1885
        %v1900 = vpop.permute.xlu0 %1899
        %1903 = vset.pattern.permute.xlu0 0
        %1904 = vperm.xlu0 %1903, %v1886
        %v1905 = vpop.permute.xlu0 %1904
        %1908 = vset.pattern.permute.xlu0 0
        %1909 = vperm.xlu0 %1908, %v1887
        %v1910 = vpop.permute.xlu0 %1909
        %1913 = vset.pattern.permute.xlu0 0
        %1914 = vperm.xlu0 %1913, %v1888
        %v1915 = vpop.permute.xlu0 %1914
        %1918 = vset.pattern.permute.xlu0 0
        %1919 = vperm.xlu0 %1918, %v1889
        %v1920 = vpop.permute.xlu0 %1919
        %1923 = vset.pattern.permute.xlu0 0
        %1924 = vperm.xlu0 %1923, %v1890
        %v1925 = vpop.permute.xlu0 %1924
        %1928 = vset.pattern.permute.xlu0 0
        %1929 = vperm.xlu0 %1928, %v1891
        %v1930 = vpop.permute.xlu0 %1929
        %v1940 = vunpack.c.l.b16 %v1867
        %v1941 = vunpack.c.l.b16 %v1868
        %v1942 = vunpack.c.l.b16 %v1869
        %v1943 = vunpack.c.l.b16 %v1870
        %v1944 = vunpack.c.l.b16 %v1871
        %v1945 = vunpack.c.l.b16 %v1872
        %v1946 = vunpack.c.l.b16 %v1873
        %v1947 = vunpack.c.l.b16 %v1874
        %v1948 = vpack.c.b16 %v1941, %v1940
        %v1949 = vpack.c.b16 %v1943, %v1942
        %v1950 = vpack.c.b16 %v1945, %v1944
        %v1951 = vpack.c.b16 %v1947, %v1946
        %v1953 = vsel %vm719, %v1948, 0
        %v1956 = vsel %vm719, %v1949, 0
        %v1959 = vsel %vm719, %v1950, 0
        %v1962 = vsel %vm719, %v1951, 0
        %1964 = vmatpush.bf16.msra.mxu0 0
        %1965 = vmatpush.bf16.msra.mxu0 0
        %1966 = vmatpush.bf16.msra.mxu0 0
        %1967 = vmatpush.bf16.msra.mxu0 0
        %1968 = vmatpush.bf16.msra.mxu0 %v1881
        %1969 = vmatpush.bf16.msra.mxu0 %v1879
        %1970 = vmatpush.bf16.msra.mxu0 %v1877
        %1971 = vmatpush.bf16.msra.mxu0 %v1875
        %1972 = vmatmul.bf16.gmra.mxu0 %v1953
        %v1973 = vpop.f32.mrf.mxu0
        %v1974 = vadd.f32 %v1895, %v1973
        %v1975 = vpop.f32.mrf.mxu0
        %v1976 = vadd.f32 %v1900, %v1975
        %1977 = vmatmul.bf16.gmra.mxu0 %v1956
        %v1978 = vpop.f32.mrf.mxu0
        %v1979 = vadd.f32 %v1905, %v1978
        %v1980 = vpop.f32.mrf.mxu0
        %v1981 = vadd.f32 %v1910, %v1980
        %1982 = vmatmul.bf16.gmra.mxu0 %v1959
        %v1983 = vpop.f32.mrf.mxu0
        %v1984 = vadd.f32 %v1915, %v1983
        %v1985 = vpop.f32.mrf.mxu0
        %v1986 = vadd.f32 %v1920, %v1985
        %1987 = vmatmul.bf16.gmra.mxu0 %v1962
        %v1988 = vpop.f32.mrf.mxu0
        %v1989 = vadd.f32 %v1925, %v1988
        %v1990 = vpop.f32.mrf.mxu0
        %v1991 = vadd.f32 %v1930, %v1990
        %1992 = vdwg.mxu0
        %1993 = vmatpush.bf16.msra.mxu0 0
        %1994 = vmatpush.bf16.msra.mxu0 0
        %1995 = vmatpush.bf16.msra.mxu0 0
        %1996 = vmatpush.bf16.msra.mxu0 0
        %1997 = vmatpush.bf16.msra.mxu0 %v1882
        %1998 = vmatpush.bf16.msra.mxu0 %v1880
        %1999 = vmatpush.bf16.msra.mxu0 %v1878
        %2000 = vmatpush.bf16.msra.mxu0 %v1876
        %2001 = vmatmul.bf16.gmra.mxu0 %v1953
        %v2002 = vpop.f32.mrf.mxu0
        %v2003 = vadd.f32 %v1895, %v2002
        %v2004 = vpop.f32.mrf.mxu0
        %v2005 = vadd.f32 %v1900, %v2004
        %2006 = vmatmul.bf16.gmra.mxu0 %v1956
        %v2007 = vpop.f32.mrf.mxu0
        %v2008 = vadd.f32 %v1905, %v2007
        %v2009 = vpop.f32.mrf.mxu0
        %v2010 = vadd.f32 %v1910, %v2009
        %2011 = vmatmul.bf16.gmra.mxu0 %v1959
        %v2012 = vpop.f32.mrf.mxu0
        %v2013 = vadd.f32 %v1915, %v2012
        %v2014 = vpop.f32.mrf.mxu0
        %v2015 = vadd.f32 %v1920, %v2014
        %2016 = vmatmul.bf16.gmra.mxu0 %v1962
        %v2017 = vpop.f32.mrf.mxu0
        %v2018 = vadd.f32 %v1925, %v2017
        %v2019 = vpop.f32.mrf.mxu0
        %v2020 = vadd.f32 %v1930, %v2019
        %2021 = vdwg.mxu0
        %v2022 = vadd.f32 %v1326, %v1974
        %v2023 = vadd.f32 %v1327, %v2003
        %v2024 = vadd.f32 %v1328, %v1976
        %v2025 = vadd.f32 %v1329, %v2005
        %v2026 = vadd.f32 %v1330, %v1979
        %v2027 = vadd.f32 %v1331, %v2008
        %v2028 = vadd.f32 %v1332, %v1981
        %v2029 = vadd.f32 %v1333, %v2010
        %v2030 = vadd.f32 %v1334, %v1984
        %v2031 = vadd.f32 %v1335, %v2013
        %v2032 = vadd.f32 %v1336, %v1986
        %v2033 = vadd.f32 %v1337, %v2015
        %v2034 = vadd.f32 %v1338, %v1989
        %v2035 = vadd.f32 %v1339, %v2018
        %v2036 = vadd.f32 %v1340, %v1991
        %v2037 = vadd.f32 %v1341, %v2020
        %v2038 = vmul.f32 %v2022, %v1322
        %v2039 = vmul.f32 %v2023, %v1323
        %v2040 = vmul.f32 %v2024, %v1322
        %v2041 = vmul.f32 %v2025, %v1323
        %v2042 = vmul.f32 %v2026, %v1322
        %v2043 = vmul.f32 %v2027, %v1323
        %v2044 = vmul.f32 %v2028, %v1322
        %v2045 = vmul.f32 %v2029, %v1323
        %v2046 = vmul.f32 %v2030, %v1322
        %v2047 = vmul.f32 %v2031, %v1323
        %v2048 = vmul.f32 %v2032, %v1322
        %v2049 = vmul.f32 %v2033, %v1323
        %v2050 = vmul.f32 %v2034, %v1322
        %v2051 = vmul.f32 %v2035, %v1323
        %v2052 = vmul.f32 %v2036, %v1322
        %v2053 = vmul.f32 %v2037, %v1323
        %s2054 = scalar_lea.vmem %s5, 192
        %v2055 = vld [vmem:[%s2054] sm:$0xf]
        %v2056 = vld [vmem:[%s2054 + $0x4] sm:$0xf]
        %v2057 = vld [vmem:[%s2054 + $0x8] sm:$0xf]
        %v2058 = vld [vmem:[%s2054 + $0xc] sm:$0xf]
        %v2059 = vld [vmem:[%s2054 + $0x10] sm:$0xf]
        %v2060 = vld [vmem:[%s2054 + $0x14] sm:$0xf]
        %v2061 = vld [vmem:[%s2054 + $0x18] sm:$0xf]
        %v2062 = vld [vmem:[%s2054 + $0x1c] sm:$0xf]
        %v2063 = vld [vmem:[%s2054 + $0x20] sm:$0xf]
        %v2064 = vld [vmem:[%s2054 + $0x24] sm:$0xf]
        %v2065 = vld [vmem:[%s2054 + $0x28] sm:$0xf]
        %v2066 = vld [vmem:[%s2054 + $0x2c] sm:$0xf]
        %v2067 = vld [vmem:[%s2054 + $0x30] sm:$0xf]
        %v2068 = vld [vmem:[%s2054 + $0x34] sm:$0xf]
        %v2069 = vld [vmem:[%s2054 + $0x38] sm:$0xf]
        %v2070 = vld [vmem:[%s2054 + $0x3c] sm:$0xf]
        %v2071 = vld [vmem:[%s2054 + $0x40] sm:$0xf]
        %v2072 = vld [vmem:[%s2054 + $0x44] sm:$0xf]
        %v2073 = vld [vmem:[%s2054 + $0x48] sm:$0xf]
        %v2074 = vld [vmem:[%s2054 + $0x4c] sm:$0xf]
        %v2075 = vld [vmem:[%s2054 + $0x50] sm:$0xf]
        %v2076 = vld [vmem:[%s2054 + $0x54] sm:$0xf]
        %v2077 = vld [vmem:[%s2054 + $0x58] sm:$0xf]
        %v2078 = vld [vmem:[%s2054 + $0x5c] sm:$0xf]
        %v2079 = vpack.c.bf16 %v2040, %v2038
        %v2080 = vpack.c.bf16 %v2041, %v2039
        %v2081 = vpack.c.bf16 %v2044, %v2042
        %v2082 = vpack.c.bf16 %v2045, %v2043
        %v2083 = vpack.c.bf16 %v2048, %v2046
        %v2084 = vpack.c.bf16 %v2049, %v2047
        %v2085 = vpack.c.bf16 %v2052, %v2050
        %v2086 = vpack.c.bf16 %v2053, %v2051
        %v2111 = vunpack.c.l.b16 %v2055
        %v2112 = vunpack.c.l.b16 %v2056
        %v2113 = vunpack.c.l.b16 %v2057
        %v2114 = vunpack.c.l.b16 %v2058
        %v2115 = vunpack.c.l.b16 %v2059
        %v2116 = vunpack.c.l.b16 %v2060
        %v2117 = vunpack.c.l.b16 %v2061
        %v2118 = vunpack.c.l.b16 %v2062
        %v2119 = vunpack.c.l.b16 %v2063
        %v2120 = vunpack.c.l.b16 %v2064
        %v2121 = vunpack.c.l.b16 %v2065
        %v2122 = vunpack.c.l.b16 %v2066
        %v2123 = vunpack.c.l.b16 %v2067
        %v2124 = vunpack.c.l.b16 %v2068
        %v2125 = vunpack.c.l.b16 %v2069
        %v2126 = vunpack.c.l.b16 %v2070
        %v2127 = vunpack.c.l.b16 %v2071
        %v2128 = vunpack.c.l.b16 %v2072
        %v2129 = vunpack.c.l.b16 %v2073
        %v2130 = vunpack.c.l.b16 %v2074
        %v2131 = vunpack.c.l.b16 %v2075
        %v2132 = vunpack.c.l.b16 %v2076
        %v2133 = vunpack.c.l.b16 %v2077
        %v2134 = vunpack.c.l.b16 %v2078
        %v2135 = vpack.c.b16 %v2112, %v2111
        %v2136 = vpack.c.b16 %v2114, %v2113
        %v2137 = vpack.c.b16 %v2116, %v2115
        %v2138 = vpack.c.b16 %v2118, %v2117
        %v2139 = vpack.c.b16 %v2120, %v2119
        %v2140 = vpack.c.b16 %v2122, %v2121
        %v2141 = vpack.c.b16 %v2124, %v2123
        %v2142 = vpack.c.b16 %v2126, %v2125
        %v2143 = vpack.c.b16 %v2128, %v2127
        %v2144 = vpack.c.b16 %v2130, %v2129
        %v2145 = vpack.c.b16 %v2132, %v2131
        %v2146 = vpack.c.b16 %v2134, %v2133
        %v2148 = vsel %vm719, %v2135, 0
        %v2151 = vsel %vm719, %v2136, 0
        %v2154 = vsel %vm719, %v2137, 0
        %v2157 = vsel %vm719, %v2138, 0
        %v2160 = vsel %vm719, %v2139, 0
        %v2163 = vsel %vm719, %v2140, 0
        %v2166 = vsel %vm719, %v2141, 0
        %v2169 = vsel %vm719, %v2142, 0
        %v2172 = vsel %vm719, %v2143, 0
        %v2175 = vsel %vm719, %v2144, 0
        %v2178 = vsel %vm719, %v2145, 0
        %v2181 = vsel %vm719, %v2146, 0
        %2183 = vmatpush.bf16.msra.mxu0 0
        %2184 = vmatpush.bf16.msra.mxu0 0
        %2185 = vmatpush.bf16.msra.mxu0 0
        %2186 = vmatpush.bf16.msra.mxu0 0
        %2187 = vmatpush.bf16.msra.mxu0 %v2085
        %2188 = vmatpush.bf16.msra.mxu0 %v2083
        %2189 = vmatpush.bf16.msra.mxu0 %v2081
        %2190 = vmatpush.bf16.msra.mxu0 %v2079
        %2191 = vmatmul.bf16.gmra.mxu0 %v2148
        %v2192 = vpop.f32.mrf.mxu0
        %v2193 = vadd.f32 0.0, %v2192
        %v2194 = vpop.f32.mrf.mxu0
        %v2195 = vadd.f32 0.0, %v2194
        %2196 = vmatmul.bf16.gmra.mxu0 %v2151
        %v2197 = vpop.f32.mrf.mxu0
        %v2198 = vadd.f32 0.0, %v2197
        %v2199 = vpop.f32.mrf.mxu0
        %v2200 = vadd.f32 0.0, %v2199
        %2201 = vmatmul.bf16.gmra.mxu0 %v2154
        %v2202 = vpop.f32.mrf.mxu0
        %v2203 = vadd.f32 0.0, %v2202
        %v2204 = vpop.f32.mrf.mxu0
        %v2205 = vadd.f32 0.0, %v2204
        %2206 = vmatmul.bf16.gmra.mxu0 %v2157
        %v2207 = vpop.f32.mrf.mxu0
        %v2208 = vadd.f32 0.0, %v2207
        %v2209 = vpop.f32.mrf.mxu0
        %v2210 = vadd.f32 0.0, %v2209
        %2211 = vmatmul.bf16.gmra.mxu0 %v2160
        %v2212 = vpop.f32.mrf.mxu0
        %v2213 = vadd.f32 0.0, %v2212
        %v2214 = vpop.f32.mrf.mxu0
        %v2215 = vadd.f32 0.0, %v2214
        %2216 = vmatmul.bf16.gmra.mxu0 %v2163
        %v2217 = vpop.f32.mrf.mxu0
        %v2218 = vadd.f32 0.0, %v2217
        %v2219 = vpop.f32.mrf.mxu0
        %v2220 = vadd.f32 0.0, %v2219
        %2221 = vmatmul.bf16.gmra.mxu0 %v2166
        %v2222 = vpop.f32.mrf.mxu0
        %v2223 = vadd.f32 0.0, %v2222
        %v2224 = vpop.f32.mrf.mxu0
        %v2225 = vadd.f32 0.0, %v2224
        %2226 = vmatmul.bf16.gmra.mxu0 %v2169
        %v2227 = vpop.f32.mrf.mxu0
        %v2228 = vadd.f32 0.0, %v2227
        %v2229 = vpop.f32.mrf.mxu0
        %v2230 = vadd.f32 0.0, %v2229
        %2231 = vmatmul.bf16.gmra.mxu0 %v2172
        %v2232 = vpop.f32.mrf.mxu0
        %v2233 = vadd.f32 0.0, %v2232
        %v2234 = vpop.f32.mrf.mxu0
        %v2235 = vadd.f32 0.0, %v2234
        %2236 = vmatmul.bf16.gmra.mxu0 %v2175
        %v2237 = vpop.f32.mrf.mxu0
        %v2238 = vadd.f32 0.0, %v2237
        %v2239 = vpop.f32.mrf.mxu0
        %v2240 = vadd.f32 0.0, %v2239
        %2241 = vmatmul.bf16.gmra.mxu0 %v2178
        %v2242 = vpop.f32.mrf.mxu0
        %v2243 = vadd.f32 0.0, %v2242
        %v2244 = vpop.f32.mrf.mxu0
        %v2245 = vadd.f32 0.0, %v2244
        %2246 = vmatmul.bf16.gmra.mxu0 %v2181
        %v2247 = vpop.f32.mrf.mxu0
        %v2248 = vadd.f32 0.0, %v2247
        %v2249 = vpop.f32.mrf.mxu0
        %v2250 = vadd.f32 0.0, %v2249
        %2251 = vdwg.mxu0
        %2252 = vmatpush.bf16.msra.mxu0 0
        %2253 = vmatpush.bf16.msra.mxu0 0
        %2254 = vmatpush.bf16.msra.mxu0 0
        %2255 = vmatpush.bf16.msra.mxu0 0
        %2256 = vmatpush.bf16.msra.mxu0 %v2086
        %2257 = vmatpush.bf16.msra.mxu0 %v2084
        %2258 = vmatpush.bf16.msra.mxu0 %v2082
        %2259 = vmatpush.bf16.msra.mxu0 %v2080
        %2260 = vmatmul.bf16.gmra.mxu0 %v2148
        %v2261 = vpop.f32.mrf.mxu0
        %v2262 = vadd.f32 0.0, %v2261
        %v2263 = vpop.f32.mrf.mxu0
        %v2264 = vadd.f32 0.0, %v2263
        %2265 = vmatmul.bf16.gmra.mxu0 %v2151
        %v2266 = vpop.f32.mrf.mxu0
        %v2267 = vadd.f32 0.0, %v2266
        %v2268 = vpop.f32.mrf.mxu0
        %v2269 = vadd.f32 0.0, %v2268
        %2270 = vmatmul.bf16.gmra.mxu0 %v2154
        %v2271 = vpop.f32.mrf.mxu0
        %v2272 = vadd.f32 0.0, %v2271
        %v2273 = vpop.f32.mrf.mxu0
        %v2274 = vadd.f32 0.0, %v2273
        %2275 = vmatmul.bf16.gmra.mxu0 %v2157
        %v2276 = vpop.f32.mrf.mxu0
        %v2277 = vadd.f32 0.0, %v2276
        %v2278 = vpop.f32.mrf.mxu0
        %v2279 = vadd.f32 0.0, %v2278
        %2280 = vmatmul.bf16.gmra.mxu0 %v2160
        %v2281 = vpop.f32.mrf.mxu0
        %v2282 = vadd.f32 0.0, %v2281
        %v2283 = vpop.f32.mrf.mxu0
        %v2284 = vadd.f32 0.0, %v2283
        %2285 = vmatmul.bf16.gmra.mxu0 %v2163
        %v2286 = vpop.f32.mrf.mxu0
        %v2287 = vadd.f32 0.0, %v2286
        %v2288 = vpop.f32.mrf.mxu0
        %v2289 = vadd.f32 0.0, %v2288
        %2290 = vmatmul.bf16.gmra.mxu0 %v2166
        %v2291 = vpop.f32.mrf.mxu0
        %v2292 = vadd.f32 0.0, %v2291
        %v2293 = vpop.f32.mrf.mxu0
        %v2294 = vadd.f32 0.0, %v2293
        %2295 = vmatmul.bf16.gmra.mxu0 %v2169
        %v2296 = vpop.f32.mrf.mxu0
        %v2297 = vadd.f32 0.0, %v2296
        %v2298 = vpop.f32.mrf.mxu0
        %v2299 = vadd.f32 0.0, %v2298
        %2300 = vmatmul.bf16.gmra.mxu0 %v2172
        %v2301 = vpop.f32.mrf.mxu0
        %v2302 = vadd.f32 0.0, %v2301
        %v2303 = vpop.f32.mrf.mxu0
        %v2304 = vadd.f32 0.0, %v2303
        %2305 = vmatmul.bf16.gmra.mxu0 %v2175
        %v2306 = vpop.f32.mrf.mxu0
        %v2307 = vadd.f32 0.0, %v2306
        %v2308 = vpop.f32.mrf.mxu0
        %v2309 = vadd.f32 0.0, %v2308
        %2310 = vmatmul.bf16.gmra.mxu0 %v2178
        %v2311 = vpop.f32.mrf.mxu0
        %v2312 = vadd.f32 0.0, %v2311
        %v2313 = vpop.f32.mrf.mxu0
        %v2314 = vadd.f32 0.0, %v2313
        %2315 = vmatmul.bf16.gmra.mxu0 %v2181
        %v2316 = vpop.f32.mrf.mxu0
        %v2317 = vadd.f32 0.0, %v2316
        %v2318 = vpop.f32.mrf.mxu0
        %v2319 = vadd.f32 0.0, %v2318
        %2320 = vdwg.mxu0
        %s2321 = scalar_lea.vmem %s2, 4
        %v2322 = vld [vmem:[%s2321] ss:$8 sm:$0x3]
        %s2323 = scalar_lea.vmem %s2, 5
        %v2324 = vld [vmem:[%s2323] ss:$8 sm:$0x3]
        %2325 = vrot.lane.b32.xlu0 %v2193, 4
        %v2326 = vpop.permute.xlu0 %2325
        %2327 = vrot.lane.b32.xlu0 %v2195, 4
        %v2328 = vpop.permute.xlu0 %2327
        %2329 = vrot.lane.b32.xlu0 %v2198, 4
        %v2330 = vpop.permute.xlu0 %2329
        %2331 = vrot.lane.b32.xlu0 %v2200, 4
        %v2332 = vpop.permute.xlu0 %2331
        %2333 = vrot.lane.b32.xlu0 %v2203, 4
        %v2334 = vpop.permute.xlu0 %2333
        %2335 = vrot.lane.b32.xlu0 %v2205, 4
        %v2336 = vpop.permute.xlu0 %2335
        %2337 = vrot.lane.b32.xlu0 %v2208, 4
        %v2338 = vpop.permute.xlu0 %2337
        %2339 = vrot.lane.b32.xlu0 %v2210, 4
        %v2340 = vpop.permute.xlu0 %2339
        %2341 = vrot.lane.b32.xlu0 %v2262, 4
        %v2342 = vpop.permute.xlu0 %2341
        %2343 = vrot.lane.b32.xlu0 %v2264, 4
        %v2344 = vpop.permute.xlu0 %2343
        %2345 = vrot.lane.b32.xlu0 %v2267, 4
        %v2346 = vpop.permute.xlu0 %2345
        %2347 = vrot.lane.b32.xlu0 %v2269, 4
        %v2348 = vpop.permute.xlu0 %2347
        %2349 = vrot.lane.b32.xlu0 %v2272, 4
        %v2350 = vpop.permute.xlu0 %2349
        %2351 = vrot.lane.b32.xlu0 %v2274, 4
        %v2352 = vpop.permute.xlu0 %2351
        %2353 = vrot.lane.b32.xlu0 %v2277, 4
        %v2354 = vpop.permute.xlu0 %2353
        %2355 = vrot.lane.b32.xlu0 %v2279, 4
        %v2356 = vpop.permute.xlu0 %2355
        %vm2357 = vcmp.lt.s32.totalorder %v930, 4
        %v2358 = vsel %vm2357, %v2326, %v2342
        %v2359 = vsel %vm2357, %v2328, %v2344
        %v2360 = vsel %vm2357, %v2330, %v2346
        %v2361 = vsel %vm2357, %v2332, %v2348
        %v2362 = vsel %vm2357, %v2334, %v2350
        %v2363 = vsel %vm2357, %v2336, %v2352
        %v2364 = vsel %vm2357, %v2338, %v2354
        %v2365 = vsel %vm2357, %v2340, %v2356
        %v2366 = vsel %vm2357, %v2342, %v2326
        %v2367 = vsel %vm2357, %v2344, %v2328
        %v2368 = vsel %vm2357, %v2346, %v2330
        %v2369 = vsel %vm2357, %v2348, %v2332
        %v2370 = vsel %vm2357, %v2350, %v2334
        %v2371 = vsel %vm2357, %v2352, %v2336
        %v2372 = vsel %vm2357, %v2354, %v2338
        %v2373 = vsel %vm2357, %v2356, %v2340
        %v2375 = vperm.slane %v2322, 0
        %v2376 = vperm.slane %v2322, 1
        %v2379 = vmul.f32 %v2366, %v2375
        %v2380 = vmul.f32 %v2358, %v2376
        %v2381 = vmul.f32 %v2367, %v2375
        %v2382 = vmul.f32 %v2359, %v2376
        %v2383 = vmul.f32 %v2368, %v2375
        %v2384 = vmul.f32 %v2360, %v2376
        %v2385 = vmul.f32 %v2369, %v2375
        %v2386 = vmul.f32 %v2361, %v2376
        %v2387 = vmul.f32 %v2370, %v2375
        %v2388 = vmul.f32 %v2362, %v2376
        %v2389 = vmul.f32 %v2371, %v2375
        %v2390 = vmul.f32 %v2363, %v2376
        %v2391 = vmul.f32 %v2372, %v2375
        %v2392 = vmul.f32 %v2364, %v2376
        %v2393 = vmul.f32 %v2373, %v2375
        %v2394 = vmul.f32 %v2365, %v2376
        %v2395 = vadd.f32 %v2379, %v2213
        %v2396 = vadd.f32 %v2380, %v2282
        %v2397 = vadd.f32 %v2381, %v2215
        %v2398 = vadd.f32 %v2382, %v2284
        %v2399 = vadd.f32 %v2383, %v2218
        %v2400 = vadd.f32 %v2384, %v2287
        %v2401 = vadd.f32 %v2385, %v2220
        %v2402 = vadd.f32 %v2386, %v2289
        %v2403 = vadd.f32 %v2387, %v2223
        %v2404 = vadd.f32 %v2388, %v2292
        %v2405 = vadd.f32 %v2389, %v2225
        %v2406 = vadd.f32 %v2390, %v2294
        %v2407 = vadd.f32 %v2391, %v2228
        %v2408 = vadd.f32 %v2392, %v2297
        %v2409 = vadd.f32 %v2393, %v2230
        %v2410 = vadd.f32 %v2394, %v2299
        %2411 = vrot.lane.b32.xlu0 %v2233, 124
        %v2412 = vpop.permute.xlu0 %2411
        %2413 = vrot.lane.b32.xlu0 %v2235, 124
        %v2414 = vpop.permute.xlu0 %2413
        %2415 = vrot.lane.b32.xlu0 %v2238, 124
        %v2416 = vpop.permute.xlu0 %2415
        %2417 = vrot.lane.b32.xlu0 %v2240, 124
        %v2418 = vpop.permute.xlu0 %2417
        %2419 = vrot.lane.b32.xlu0 %v2243, 124
        %v2420 = vpop.permute.xlu0 %2419
        %2421 = vrot.lane.b32.xlu0 %v2245, 124
        %v2422 = vpop.permute.xlu0 %2421
        %2423 = vrot.lane.b32.xlu0 %v2248, 124
        %v2424 = vpop.permute.xlu0 %2423
        %2425 = vrot.lane.b32.xlu0 %v2250, 124
        %v2426 = vpop.permute.xlu0 %2425
        %2427 = vrot.lane.b32.xlu0 %v2302, 124
        %v2428 = vpop.permute.xlu0 %2427
        %2429 = vrot.lane.b32.xlu0 %v2304, 124
        %v2430 = vpop.permute.xlu0 %2429
        %2431 = vrot.lane.b32.xlu0 %v2307, 124
        %v2432 = vpop.permute.xlu0 %2431
        %2433 = vrot.lane.b32.xlu0 %v2309, 124
        %v2434 = vpop.permute.xlu0 %2433
        %2435 = vrot.lane.b32.xlu0 %v2312, 124
        %v2436 = vpop.permute.xlu0 %2435
        %2437 = vrot.lane.b32.xlu0 %v2314, 124
        %v2438 = vpop.permute.xlu0 %2437
        %2439 = vrot.lane.b32.xlu0 %v2317, 124
        %v2440 = vpop.permute.xlu0 %2439
        %2441 = vrot.lane.b32.xlu0 %v2319, 124
        %v2442 = vpop.permute.xlu0 %2441
        %vm2443 = vcmp.lt.s32.totalorder %v930, 124
        %v2444 = vsel %vm2443, %v2412, %v2428
        %v2445 = vsel %vm2443, %v2414, %v2430
        %v2446 = vsel %vm2443, %v2416, %v2432
        %v2447 = vsel %vm2443, %v2418, %v2434
        %v2448 = vsel %vm2443, %v2420, %v2436
        %v2449 = vsel %vm2443, %v2422, %v2438
        %v2450 = vsel %vm2443, %v2424, %v2440
        %v2451 = vsel %vm2443, %v2426, %v2442
        %v2452 = vsel %vm2443, %v2428, %v2412
        %v2453 = vsel %vm2443, %v2430, %v2414
        %v2454 = vsel %vm2443, %v2432, %v2416
        %v2455 = vsel %vm2443, %v2434, %v2418
        %v2456 = vsel %vm2443, %v2436, %v2420
        %v2457 = vsel %vm2443, %v2438, %v2422
        %v2458 = vsel %vm2443, %v2440, %v2424
        %v2459 = vsel %vm2443, %v2442, %v2426
        %v2461 = vperm.slane %v2324, 0
        %v2462 = vperm.slane %v2324, 1
        %v2465 = vmul.f32 %v2444, %v2461
        %v2466 = vmul.f32 %v2452, %v2462
        %v2467 = vmul.f32 %v2445, %v2461
        %v2468 = vmul.f32 %v2453, %v2462
        %v2469 = vmul.f32 %v2446, %v2461
        %v2470 = vmul.f32 %v2454, %v2462
        %v2471 = vmul.f32 %v2447, %v2461
        %v2472 = vmul.f32 %v2455, %v2462
        %v2473 = vmul.f32 %v2448, %v2461
        %v2474 = vmul.f32 %v2456, %v2462
        %v2475 = vmul.f32 %v2449, %v2461
        %v2476 = vmul.f32 %v2457, %v2462
        %v2477 = vmul.f32 %v2450, %v2461
        %v2478 = vmul.f32 %v2458, %v2462
        %v2479 = vmul.f32 %v2451, %v2461
        %v2480 = vmul.f32 %v2459, %v2462
        %v2481 = vadd.f32 %v2395, %v2465
        %v2482 = vadd.f32 %v2396, %v2466
        %v2483 = vadd.f32 %v2397, %v2467
        %v2484 = vadd.f32 %v2398, %v2468
        %v2485 = vadd.f32 %v2399, %v2469
        %v2486 = vadd.f32 %v2400, %v2470
        %v2487 = vadd.f32 %v2401, %v2471
        %v2488 = vadd.f32 %v2402, %v2472
        %v2489 = vadd.f32 %v2403, %v2473
        %v2490 = vadd.f32 %v2404, %v2474
        %v2491 = vadd.f32 %v2405, %v2475
        %v2492 = vadd.f32 %v2406, %v2476
        %v2493 = vadd.f32 %v2407, %v2477
        %v2494 = vadd.f32 %v2408, %v2478
        %v2495 = vadd.f32 %v2409, %v2479
        %v2496 = vadd.f32 %v2410, %v2480
        %s2497 = scalar_lea.vmem %s6, 128
        %v2498 = vld [vmem:[%s2497] sm:$0xff]
        %v2499 = vld [vmem:[%s2497 + $0x8] sm:$0xff]
        %v2500 = vld [vmem:[%s2497 + $0x10] sm:$0xff]
        %v2501 = vld [vmem:[%s2497 + $0x18] sm:$0xff]
        %v2502 = vld [vmem:[%s2497 + $0x20] sm:$0xff]
        %v2503 = vld [vmem:[%s2497 + $0x28] sm:$0xff]
        %v2504 = vld [vmem:[%s2497 + $0x30] sm:$0xff]
        %v2505 = vld [vmem:[%s2497 + $0x38] sm:$0xff]
        %2507 = vset.pattern.permute.xlu0 0
        %2508 = vperm.xlu0 %2507, %v2498
        %v2509 = vpop.permute.xlu0 %2508
        %2512 = vset.pattern.permute.xlu0 0
        %2513 = vperm.xlu0 %2512, %v2499
        %v2514 = vpop.permute.xlu0 %2513
        %2517 = vset.pattern.permute.xlu0 0
        %2518 = vperm.xlu0 %2517, %v2500
        %v2519 = vpop.permute.xlu0 %2518
        %2522 = vset.pattern.permute.xlu0 0
        %2523 = vperm.xlu0 %2522, %v2501
        %v2524 = vpop.permute.xlu0 %2523
        %2527 = vset.pattern.permute.xlu0 0
        %2528 = vperm.xlu0 %2527, %v2502
        %v2529 = vpop.permute.xlu0 %2528
        %2532 = vset.pattern.permute.xlu0 0
        %2533 = vperm.xlu0 %2532, %v2503
        %v2534 = vpop.permute.xlu0 %2533
        %2537 = vset.pattern.permute.xlu0 0
        %2538 = vperm.xlu0 %2537, %v2504
        %v2539 = vpop.permute.xlu0 %2538
        %2542 = vset.pattern.permute.xlu0 0
        %2543 = vperm.xlu0 %2542, %v2505
        %v2544 = vpop.permute.xlu0 %2543
        %v2546 = vadd.f32 %v2481, %v2509
        %v2547 = vadd.f32 %v2482, %v2509
        %v2548 = vadd.f32 %v2483, %v2514
        %v2549 = vadd.f32 %v2484, %v2514
        %v2550 = vadd.f32 %v2485, %v2519
        %v2551 = vadd.f32 %v2486, %v2519
        %v2552 = vadd.f32 %v2487, %v2524
        %v2553 = vadd.f32 %v2488, %v2524
        %v2554 = vadd.f32 %v2489, %v2529
        %v2555 = vadd.f32 %v2490, %v2529
        %v2556 = vadd.f32 %v2491, %v2534
        %v2557 = vadd.f32 %v2492, %v2534
        %v2558 = vadd.f32 %v2493, %v2539
        %v2559 = vadd.f32 %v2494, %v2539
        %v2560 = vadd.f32 %v2495, %v2544
        %v2561 = vadd.f32 %v2496, %v2544
        %v2562 = vmax.f32 %v2546, 0.0
        %v2563 = vmax.f32 %v2547, 0.0
        %v2564 = vmax.f32 %v2548, 0.0
        %v2565 = vmax.f32 %v2549, 0.0
        %v2566 = vmax.f32 %v2550, 0.0
        %v2567 = vmax.f32 %v2551, 0.0
        %v2568 = vmax.f32 %v2552, 0.0
        %v2569 = vmax.f32 %v2553, 0.0
        %v2570 = vmax.f32 %v2554, 0.0
        %v2571 = vmax.f32 %v2555, 0.0
        %v2572 = vmax.f32 %v2556, 0.0
        %v2573 = vmax.f32 %v2557, 0.0
        %v2574 = vmax.f32 %v2558, 0.0
        %v2575 = vmax.f32 %v2559, 0.0
        %v2576 = vmax.f32 %v2560, 0.0
        %v2577 = vmax.f32 %v2561, 0.0
        %s2578 = scalar_lea.vmem %s7, 64
        %v2579 = vld [vmem:[%s2578] sm:$0xf]
        %v2580 = vld [vmem:[%s2578 + $0x4] sm:$0xf]
        %v2581 = vld [vmem:[%s2578 + $0x8] sm:$0xf]
        %v2582 = vld [vmem:[%s2578 + $0xc] sm:$0xf]
        %v2583 = vld [vmem:[%s2578 + $0x10] sm:$0xf]
        %v2584 = vld [vmem:[%s2578 + $0x14] sm:$0xf]
        %v2585 = vld [vmem:[%s2578 + $0x18] sm:$0xf]
        %v2586 = vld [vmem:[%s2578 + $0x1c] sm:$0xf]
        %v2587 = vpack.c.bf16 %v2564, %v2562
        %v2588 = vpack.c.bf16 %v2565, %v2563
        %v2589 = vpack.c.bf16 %v2568, %v2566
        %v2590 = vpack.c.bf16 %v2569, %v2567
        %v2591 = vpack.c.bf16 %v2572, %v2570
        %v2592 = vpack.c.bf16 %v2573, %v2571
        %v2593 = vpack.c.bf16 %v2576, %v2574
        %v2594 = vpack.c.bf16 %v2577, %v2575
        %s2595 = scalar_lea.vmem %s8, 128
        %v2596 = vld [vmem:[%s2595] sm:$0xff]
        %v2597 = vld [vmem:[%s2595 + $0x8] sm:$0xff]
        %v2598 = vld [vmem:[%s2595 + $0x10] sm:$0xff]
        %v2599 = vld [vmem:[%s2595 + $0x18] sm:$0xff]
        %v2600 = vld [vmem:[%s2595 + $0x20] sm:$0xff]
        %v2601 = vld [vmem:[%s2595 + $0x28] sm:$0xff]
        %v2602 = vld [vmem:[%s2595 + $0x30] sm:$0xff]
        %v2603 = vld [vmem:[%s2595 + $0x38] sm:$0xff]
        %2605 = vset.pattern.permute.xlu0 0
        %2606 = vperm.xlu0 %2605, %v2596
        %v2607 = vpop.permute.xlu0 %2606
        %2610 = vset.pattern.permute.xlu0 0
        %2611 = vperm.xlu0 %2610, %v2597
        %v2612 = vpop.permute.xlu0 %2611
        %2615 = vset.pattern.permute.xlu0 0
        %2616 = vperm.xlu0 %2615, %v2598
        %v2617 = vpop.permute.xlu0 %2616
        %2620 = vset.pattern.permute.xlu0 0
        %2621 = vperm.xlu0 %2620, %v2599
        %v2622 = vpop.permute.xlu0 %2621
        %2625 = vset.pattern.permute.xlu0 0
        %2626 = vperm.xlu0 %2625, %v2600
        %v2627 = vpop.permute.xlu0 %2626
        %2630 = vset.pattern.permute.xlu0 0
        %2631 = vperm.xlu0 %2630, %v2601
        %v2632 = vpop.permute.xlu0 %2631
        %2635 = vset.pattern.permute.xlu0 0
        %2636 = vperm.xlu0 %2635, %v2602
        %v2637 = vpop.permute.xlu0 %2636
        %2640 = vset.pattern.permute.xlu0 0
        %2641 = vperm.xlu0 %2640, %v2603
        %v2642 = vpop.permute.xlu0 %2641
        %v2652 = vunpack.c.l.b16 %v2579
        %v2653 = vunpack.c.l.b16 %v2580
        %v2654 = vunpack.c.l.b16 %v2581
        %v2655 = vunpack.c.l.b16 %v2582
        %v2656 = vunpack.c.l.b16 %v2583
        %v2657 = vunpack.c.l.b16 %v2584
        %v2658 = vunpack.c.l.b16 %v2585
        %v2659 = vunpack.c.l.b16 %v2586
        %v2660 = vpack.c.b16 %v2653, %v2652
        %v2661 = vpack.c.b16 %v2655, %v2654
        %v2662 = vpack.c.b16 %v2657, %v2656
        %v2663 = vpack.c.b16 %v2659, %v2658
        %v2665 = vsel %vm719, %v2660, 0
        %v2668 = vsel %vm719, %v2661, 0
        %v2671 = vsel %vm719, %v2662, 0
        %v2674 = vsel %vm719, %v2663, 0
        %2676 = vmatpush.bf16.msra.mxu0 0
        %2677 = vmatpush.bf16.msra.mxu0 0
        %2678 = vmatpush.bf16.msra.mxu0 0
        %2679 = vmatpush.bf16.msra.mxu0 0
        %2680 = vmatpush.bf16.msra.mxu0 %v2593
        %2681 = vmatpush.bf16.msra.mxu0 %v2591
        %2682 = vmatpush.bf16.msra.mxu0 %v2589
        %2683 = vmatpush.bf16.msra.mxu0 %v2587
        %2684 = vmatmul.bf16.gmra.mxu0 %v2665
        %v2685 = vpop.f32.mrf.mxu0
        %v2686 = vadd.f32 %v2607, %v2685
        %v2687 = vpop.f32.mrf.mxu0
        %v2688 = vadd.f32 %v2612, %v2687
        %2689 = vmatmul.bf16.gmra.mxu0 %v2668
        %v2690 = vpop.f32.mrf.mxu0
        %v2691 = vadd.f32 %v2617, %v2690
        %v2692 = vpop.f32.mrf.mxu0
        %v2693 = vadd.f32 %v2622, %v2692
        %2694 = vmatmul.bf16.gmra.mxu0 %v2671
        %v2695 = vpop.f32.mrf.mxu0
        %v2696 = vadd.f32 %v2627, %v2695
        %v2697 = vpop.f32.mrf.mxu0
        %v2698 = vadd.f32 %v2632, %v2697
        %2699 = vmatmul.bf16.gmra.mxu0 %v2674
        %v2700 = vpop.f32.mrf.mxu0
        %v2701 = vadd.f32 %v2637, %v2700
        %v2702 = vpop.f32.mrf.mxu0
        %v2703 = vadd.f32 %v2642, %v2702
        %2704 = vdwg.mxu0
        %2705 = vmatpush.bf16.msra.mxu0 0
        %2706 = vmatpush.bf16.msra.mxu0 0
        %2707 = vmatpush.bf16.msra.mxu0 0
        %2708 = vmatpush.bf16.msra.mxu0 0
        %2709 = vmatpush.bf16.msra.mxu0 %v2594
        %2710 = vmatpush.bf16.msra.mxu0 %v2592
        %2711 = vmatpush.bf16.msra.mxu0 %v2590
        %2712 = vmatpush.bf16.msra.mxu0 %v2588
        %2713 = vmatmul.bf16.gmra.mxu0 %v2665
        %v2714 = vpop.f32.mrf.mxu0
        %v2715 = vadd.f32 %v2607, %v2714
        %v2716 = vpop.f32.mrf.mxu0
        %v2717 = vadd.f32 %v2612, %v2716
        %2718 = vmatmul.bf16.gmra.mxu0 %v2668
        %v2719 = vpop.f32.mrf.mxu0
        %v2720 = vadd.f32 %v2617, %v2719
        %v2721 = vpop.f32.mrf.mxu0
        %v2722 = vadd.f32 %v2622, %v2721
        %2723 = vmatmul.bf16.gmra.mxu0 %v2671
        %v2724 = vpop.f32.mrf.mxu0
        %v2725 = vadd.f32 %v2627, %v2724
        %v2726 = vpop.f32.mrf.mxu0
        %v2727 = vadd.f32 %v2632, %v2726
        %2728 = vmatmul.bf16.gmra.mxu0 %v2674
        %v2729 = vpop.f32.mrf.mxu0
        %v2730 = vadd.f32 %v2637, %v2729
        %v2731 = vpop.f32.mrf.mxu0
        %v2732 = vadd.f32 %v2642, %v2731
        %2733 = vdwg.mxu0
        %v2734 = vadd.f32 %v2038, %v2686
        %v2735 = vadd.f32 %v2039, %v2715
        %v2736 = vadd.f32 %v2040, %v2688
        %v2737 = vadd.f32 %v2041, %v2717
        %v2738 = vadd.f32 %v2042, %v2691
        %v2739 = vadd.f32 %v2043, %v2720
        %v2740 = vadd.f32 %v2044, %v2693
        %v2741 = vadd.f32 %v2045, %v2722
        %v2742 = vadd.f32 %v2046, %v2696
        %v2743 = vadd.f32 %v2047, %v2725
        %v2744 = vadd.f32 %v2048, %v2698
        %v2745 = vadd.f32 %v2049, %v2727
        %v2746 = vadd.f32 %v2050, %v2701
        %v2747 = vadd.f32 %v2051, %v2730
        %v2748 = vadd.f32 %v2052, %v2703
        %v2749 = vadd.f32 %v2053, %v2732
        %v2750 = vmul.f32 %v2734, %v1322
        %v2751 = vmul.f32 %v2735, %v1323
        %v2752 = vmul.f32 %v2736, %v1322
        %v2753 = vmul.f32 %v2737, %v1323
        %v2754 = vmul.f32 %v2738, %v1322
        %v2755 = vmul.f32 %v2739, %v1323
        %v2756 = vmul.f32 %v2740, %v1322
        %v2757 = vmul.f32 %v2741, %v1323
        %v2758 = vmul.f32 %v2742, %v1322
        %v2759 = vmul.f32 %v2743, %v1323
        %v2760 = vmul.f32 %v2744, %v1322
        %v2761 = vmul.f32 %v2745, %v1323
        %v2762 = vmul.f32 %v2746, %v1322
        %v2763 = vmul.f32 %v2747, %v1323
        %v2764 = vmul.f32 %v2748, %v1322
        %v2765 = vmul.f32 %v2749, %v1323
        %v2766 = vld [vmem:[%s9] sm:$0xf]
        %v2767 = vpack.c.bf16 %v2752, %v2750
        %v2768 = vpack.c.bf16 %v2753, %v2751
        %v2769 = vpack.c.bf16 %v2756, %v2754
        %v2770 = vpack.c.bf16 %v2757, %v2755
        %v2771 = vpack.c.bf16 %v2760, %v2758
        %v2772 = vpack.c.bf16 %v2761, %v2759
        %v2773 = vpack.c.bf16 %v2764, %v2762
        %v2774 = vpack.c.bf16 %v2765, %v2763
        %v2775 = vld [vmem:[%s10] sm:$0xff]
        %2777 = vset.pattern.permute.xlu0 0
        %2778 = vperm.xlu0 %2777, %v2775
        %v2779 = vpop.permute.xlu0 %2778
        %v2782 = vsel %vm719, %v2766, 0
        %2784 = vmatpush.bf16.msra.mxu0 0
        %2785 = vmatpush.bf16.msra.mxu0 0
        %2786 = vmatpush.bf16.msra.mxu0 0
        %2787 = vmatpush.bf16.msra.mxu0 0
        %2788 = vmatpush.bf16.msra.mxu0 %v2773
        %2789 = vmatpush.bf16.msra.mxu0 %v2771
        %2790 = vmatpush.bf16.msra.mxu0 %v2769
        %2791 = vmatpush.bf16.msra.mxu0 %v2767
        %2792 = vmatmul.bf16.gmra.mxu0 %v2782
        %v2793 = vpop.f32.mrf.mxu0
        %v2794 = vadd.f32 %v2779, %v2793
        %v2795 = vpop.f32.mrf.mxu0
        %2796 = vdwg.mxu0
        %2797 = vmatpush.bf16.msra.mxu0 0
        %2798 = vmatpush.bf16.msra.mxu0 0
        %2799 = vmatpush.bf16.msra.mxu0 0
        %2800 = vmatpush.bf16.msra.mxu0 0
        %2801 = vmatpush.bf16.msra.mxu0 %v2774
        %2802 = vmatpush.bf16.msra.mxu0 %v2772
        %2803 = vmatpush.bf16.msra.mxu0 %v2770
        %2804 = vmatpush.bf16.msra.mxu0 %v2768
        %2805 = vmatmul.bf16.gmra.mxu0 %v2782
        %v2806 = vpop.f32.mrf.mxu0
        %v2807 = vadd.f32 %v2779, %v2806
        %v2808 = vpop.f32.mrf.mxu0
        %2809 = vdwg.mxu0
        %v2810 = vmul.f32 %v2794, %v1322
        %v2811 = vmul.f32 %v2807, %v1323
        %2812 = vst [vmem:[%s446] sm:$0xff] %v2810
        %2813 = vst [vmem:[%s446 + $0x8] sm:$0xff] %v2811
        %s2814 = sand.u32 %s274, 1
        %s2815 = scalar_lea.sflag [#allocation4], %s2814
        %s2816 = sand.u32 %s274, 1
        %s2817 = smul.addr %s2816, 16
        %s2818 = scalar_lea.vmem [#allocation3], %s2817
        // Predicated region
        $region103: #{tpu_custom_call.1} parent=97 // pred_check
          %p2819 = pneg %p284
        $region104: #{tpu_custom_call.1} parent=97 // pred_check_branch
          %2821 = sbr.rel (%p2819) target = $region106
        $region105: #{tpu_custom_call.1} parent=97 // pred_region
          %s2822 = smul.u32 2, %s25
          %2824 = vsyncadd %s2815, 0
          %s2825 = smul.addr %s2822, 8
          %s2826 = scalar_lea.hbm %s11, %s2825
          %s2828 = sshll.u32 %s2818, 4
          %s2829 = int_to_ptr.vmem [resolvable:$true] %s2828
          %s2830 = sshll.u32 %s2826, 4
          %s2831 = int_to_ptr.hbm [resolvable:$true] %s2830
          %2833 = dma.vmem_to_hbm [thread:$0]  %s2829, 256, %s2831, %s2815
        $region106: #{tpu_custom_call.1} parent=97 // pred_fallthru
          _
      $region98: #{tpu_custom_call.1} parent=5 // pred_fallthru
        _
      %p2834 = scmp.le.s32.totalorder 2, %s20
      // Predicated region
      $region107: #{tpu_custom_call.1} parent=5 // pred_check
        %p2835 = pneg %p2834
      $region108: #{tpu_custom_call.1} parent=5 // pred_check_branch
        %2837 = sbr.rel (%p2835) target = $region110
      $region109: #{tpu_custom_call.1} parent=5 // pred_region
        %s2838 = ssub.s32 %s20, 2
        // Predicated region
        $region111: #{tpu_custom_call.1} parent=109 // pred_check
          %p2839 = pneg %p290
        $region112: #{tpu_custom_call.1} parent=109 // pred_check_branch
          %2841 = sbr.rel (%p2839) target = $region114
        $region113: #{tpu_custom_call.1} parent=109 // pred_region
          %s2842 = sand.u32 %s275, 1
          %s2843 = scalar_lea.sflag [#allocation4], %s2842
          %s2844 = sand.u32 %s275, 1
          %s2845 = smul.addr %s2844, 16
          %s2846 = scalar_lea.vmem [#allocation3], %s2845
          %2848 = dma.done %s2843, 256
        $region114: #{tpu_custom_call.1} parent=109 // pred_fallthru
          _
      $region110: #{tpu_custom_call.1} parent=5 // pred_fallthru
        _
    $region6: #{tpu_custom_call.1} parent=1 // loop_footer
      %s24 = sadd.s32 1, %s20
    $region7: #{tpu_custom_call.1} parent=1 // loop_footer_branch
      %19 = sbr.rel target = $region3
    $region8: #{tpu_custom_call.1} parent=1 // loop_exit
      _
    %2849 = vsyncpa [#allocation4], 1
    %s2850 = scalar_lea.sflag [#allocation4], 1
    %2851 = vsyncpa %s2850, 1

</llo_original>
